<compile_context>
chip_gen: v5e
topology: v5e:2x2
jax: 0.10.0
libtpu: 0.0.40
codegen_flags: <defaults>
</compile_context>

<pallas_src>
import functools

import jax
import jax.numpy as jnp
from jax import lax
from jax.experimental import pallas as pl
from jax.experimental.pallas import tpu as pltpu


_SQRT_2_OVER_PI = 0.7978845608028654


def _gelu_tanh(x):
    # tanh-approximate GELU (== torch.nn.GELU(approximate='tanh')).
    return 0.5 * x * (1.0 + jnp.tanh(_SQRT_2_OVER_PI * (x + 0.044715 * x * x * x)))


def _mix_channel_kernel(x_ref, w1_ref, b1_ref, a1_ref, bfc1_ref, w2se_ref,
                        bfc2_ref, w2_ref, b2_ref, o_ref, *, hw_real, hw_pad):
    # x_ref : (B, C, HWp) f32      w1_ref : (2C, C)  bf16    b1_ref : (2C, 1) f32
    # a1_ref: (2C, Cr) f32 (=fc1_w.T)   bfc1_ref: (1, Cr) f32
    # w2se_ref: (2C, Cr) f32 (=fc2_w)   bfc2_ref: (2C, 1) f32
    # w2_ref: (C, 2C) bf16          b2_ref : (C, 1) f32      o_ref : (B, C, HWp)
    w1 = w1_ref[...]
    w2 = w2_ref[...]
    b1 = b1_ref[...]
    b2 = b2_ref[...]
    a1 = a1_ref[...]
    bfc1 = bfc1_ref[...]
    w2se = w2se_ref[...]
    bfc2 = bfc2_ref[...]
    B = x_ref.shape[0]

    def body(b, carry):
        x = x_ref[b]                                            # (C, HWp) f32

        # ---- amplify_channel: 1x1 conv (+ folded BN) + GELU (bf16 MXU, f32 acc) ----
        y1 = jnp.dot(w1, x.astype(jnp.bfloat16),
                     preferred_element_type=jnp.float32)        # (2C, HWp) f32
        y1 = _gelu_tanh(y1 + b1)

        # ---- SE: global avg-pool -> FC -> ReLU -> FC -> sigmoid -> scale (f32) ----
        if hw_real == hw_pad:
            pooled = jnp.mean(y1, axis=1, keepdims=True)        # (2C, 1)
        else:
            col = lax.broadcasted_iota(jnp.int32, y1.shape, 1)
            pooled = jnp.sum(jnp.where(col < hw_real, y1, 0.0),
                             axis=1, keepdims=True) * (1.0 / hw_real)
        h = jnp.sum(a1 * pooled, axis=0, keepdims=True) + bfc1  # (1, Cr)
        h = jnp.maximum(h, 0.0)
        s = jnp.sum(w2se * h, axis=1, keepdims=True) + bfc2     # (2C, 1)
        s = jax.nn.sigmoid(s)
        y1s = (y1 * s).astype(jnp.bfloat16)                     # channel-wise scale

        # ---- mixing_channel: 1x1 conv (+ folded BN) + GELU ----
        y2 = jnp.dot(w2, y1s, preferred_element_type=jnp.float32)  # (C, HWp) f32
        y2 = _gelu_tanh(y2 + b2)

        # ---- residual (f32 x) ----
        o_ref[b] = (y2 + x).astype(o_ref.dtype)
        return carry

    lax.fori_loop(0, B, body, 0, unroll=True)


def _fold_bn(conv_w, conv_b, gamma, beta, mean, var, eps=1e-5):
    """Fold eval-mode BatchNorm2d into a preceding 1x1 conv (exact)."""
    scale = gamma / jnp.sqrt(var + eps)
    w = conv_w.reshape(conv_w.shape[0], -1) * scale[:, None]
    b = (conv_b - mean) * scale + beta
    return w, b


def _pick_batch_block(n, bytes_per_image, vmem_budget=8 << 20):
    """Largest divisor of n under a conservative VMEM budget; prefer >=2 grid
    steps so the 'parallel' batch axis can split across two TensorCores."""
    per_img = bytes_per_image * 6   # x dbuf(2) + out dbuf(2) + resident f32 y1(~2)
    cap = max(1, vmem_budget // max(per_img, 1))
    divisors = [b for b in range(1, n + 1) if n % b == 0 and b <= cap]
    best = max(divisors) if divisors else 1
    if best == n and n > 1:
        smaller = [b for b in divisors if b <= n // 2]
        if smaller:
            best = max(smaller)
    return best


def mix_channel(x, p):
    """MixChannel forward.  x: (N, C, H, W) float32 NCHW -> same shape."""
    N, C, H, W = x.shape
    HW = H * W
    C2 = p["conv1_w"].shape[0]            # expanded channels (= C * expand_factor)
    Cr = p["fc1_w"].shape[0]              # SE bottleneck (= C2 // reduction)

    w1, b1 = _fold_bn(p["conv1_w"], p["conv1_b"], p["bn1_gamma"], p["bn1_beta"],
                      p["bn1_mean"], p["bn1_var"])
    w2, b2 = _fold_bn(p["conv2_w"], p["conv2_b"], p["bn2_gamma"], p["bn2_beta"],
                      p["bn2_mean"], p["bn2_var"])

    # Lane-dense layout: pad the H*W (lane) axis up to a multiple of 128.
    HWp = ((HW + 127) // 128) * 128
    x_flat = x.reshape(N, C, HW)
    if HWp != HW:
        x_flat = jnp.pad(x_flat, ((0, 0), (0, 0), (0, HWp - HW)))

    Bblk = _pick_batch_block(N, C * HWp * 4)
    grid = (N // Bblk,)

    # Matmul operands in bf16 (f32 accumulation); everything else stays f32.
    w1b = w1.astype(jnp.bfloat16)                       # (2C, C)
    w2b = w2.astype(jnp.bfloat16)                       # (C, 2C)
    b1c = b1.reshape(C2, 1).astype(jnp.float32)
    b2c = b2.reshape(C, 1).astype(jnp.float32)
    a1 = p["fc1_w"].T.astype(jnp.float32)               # (2C, Cr)
    bfc1 = p["fc1_b"].reshape(1, Cr).astype(jnp.float32)
    w2se = p["fc2_w"].astype(jnp.float32)               # (2C, Cr)
    bfc2 = p["fc2_b"].reshape(C2, 1).astype(jnp.float32)

    const = lambda i: (0, 0)
    kernel = functools.partial(_mix_channel_kernel, hw_real=HW, hw_pad=HWp)

    # Rough VMEM estimate; only raise the scoped limit when blocks are large.
    est_vmem = 6 * Bblk * C * HWp * 4 + 8 * C2 * C
    cp_kwargs = dict(dimension_semantics=("parallel",))
    if est_vmem > (12 << 20):
        cp_kwargs["vmem_limit_bytes"] = min(int(est_vmem * 2), 56 << 20)

    out = pl.pallas_call(
        kernel,
        out_shape=jax.ShapeDtypeStruct((N, C, HWp), x.dtype),
        grid_spec=pltpu.PrefetchScalarGridSpec(
            num_scalar_prefetch=0,
            grid=grid,
            in_specs=[
                pl.BlockSpec((Bblk, C, HWp), lambda i: (i, 0, 0)),  # x slab
                pl.BlockSpec((C2, C), const),                       # W1 (BN folded, bf16)
                pl.BlockSpec((C2, 1), const),                       # b1
                pl.BlockSpec((C2, Cr), const),                      # fc1_w.T
                pl.BlockSpec((1, Cr), const),                       # fc1_b
                pl.BlockSpec((C2, Cr), const),                      # fc2_w
                pl.BlockSpec((C2, 1), const),                       # fc2_b
                pl.BlockSpec((C, C2), const),                       # W2 (BN folded, bf16)
                pl.BlockSpec((C, 1), const),                        # b2
            ],
            out_specs=pl.BlockSpec((Bblk, C, HWp), lambda i: (i, 0, 0)),
        ),
        compiler_params=pltpu.CompilerParams(**cp_kwargs),
    )(x_flat, w1b, b1c, a1, bfc1, w2se, bfc2, w2b, b2c)

    if HWp != HW:
        out = out[:, :, :HW]
    return out.reshape(N, C, H, W)


def _reference(x, p):
    """Pure-JAX f32 reference of the MixChannel forward (eval-mode BN, tanh GELU)."""
    eps = 1e-5

    def bn(y, g, b, m, v):
        inv = 1.0 / jnp.sqrt(v + eps)
        return (y - m[None, :, None, None]) * (g * inv)[None, :, None, None] \
            + b[None, :, None, None]

    # amplify_channel
    y = jnp.einsum("oc,nchw->nohw", p["conv1_w"].reshape(p["conv1_w"].shape[0], -1), x)
    y = y + p["conv1_b"][None, :, None, None]
    y = _gelu_tanh(bn(y, p["bn1_gamma"], p["bn1_beta"], p["bn1_mean"], p["bn1_var"]))
    # SE
    pooled = y.mean(axis=(2, 3))                              # (N, 2C)
    h = jnp.maximum(pooled @ p["fc1_w"].T + p["fc1_b"], 0.0)  # (N, Cr)
    sc = jax.nn.sigmoid(h @ p["fc2_w"].T + p["fc2_b"])        # (N, 2C)
    y = y * sc[:, :, None, None]
    # mixing_channel
    z = jnp.einsum("oc,nchw->nohw", p["conv2_w"].reshape(p["conv2_w"].shape[0], -1), y)
    z = z + p["conv2_b"][None, :, None, None]
    z = _gelu_tanh(bn(z, p["bn2_gamma"], p["bn2_beta"], p["bn2_mean"], p["bn2_var"]))
    return z + x


if __name__ == "__main__":
    key = jax.random.PRNGKey(0)
    keys = jax.random.split(key, 17)

    # Small shapes consistent with the module: reduction=16 needs
    # expand_out_channel >= 16, so use in_channel=32 (expanded=64, SE bneck=4).
    # N=4 exercises the batched grid (B_blk=2, grid=(2,)).
    N, C, H, W = 4, 32, 16, 16
    expand_factor, reduction = 2, 16
    C2 = C * expand_factor
    Cr = C2 // reduction

    x = jax.random.normal(keys[0], (N, C, H, W), dtype=jnp.float32)

    params = dict(
        conv1_w=jax.random.normal(keys[1], (C2, C, 1, 1), jnp.float32) * 0.1,
        conv1_b=jax.random.normal(keys[2], (C2,), jnp.float32) * 0.1,
        bn1_gamma=1.0 + 0.1 * jax.random.normal(keys[3], (C2,), jnp.float32),
        bn1_beta=0.1 * jax.random.normal(keys[4], (C2,), jnp.float32),
        bn1_mean=0.1 * jax.random.normal(keys[5], (C2,), jnp.float32),
        bn1_var=jnp.abs(1.0 + 0.1 * jax.random.normal(keys[6], (C2,), jnp.float32)),
        fc1_w=jax.random.normal(keys[7], (Cr, C2), jnp.float32) * 0.1,
        fc1_b=jax.random.normal(keys[8], (Cr,), jnp.float32) * 0.1,
        fc2_w=jax.random.normal(keys[9], (C2, Cr), jnp.float32) * 0.1,
        fc2_b=jax.random.normal(keys[10], (C2,), jnp.float32) * 0.1,
        conv2_w=jax.random.normal(keys[11], (C, C2, 1, 1), jnp.float32) * 0.1,
        conv2_b=jax.random.normal(keys[12], (C,), jnp.float32) * 0.1,
        bn2_gamma=1.0 + 0.1 * jax.random.normal(keys[13], (C,), jnp.float32),
        bn2_beta=0.1 * jax.random.normal(keys[14], (C,), jnp.float32),
        bn2_mean=0.1 * jax.random.normal(keys[15], (C,), jnp.float32),
        bn2_var=jnp.abs(1.0 + 0.1 * jax.random.normal(keys[16], (C,), jnp.float32)),
    )

    fwd = jax.jit(mix_channel)          # parameter folding constant-folds under jit
    y = jax.block_until_ready(fwd(x, params))

    ref = _reference(x, params)
    assert y.shape == (N, C, H, W)
    # Matmuls run on the MXU in bf16 with f32 accumulation -> ~1e-3-scale
    # deviation from the pure-f32 reference; 1e-2 tolerance is comfortable.
    max_err = float(jnp.max(jnp.abs(y - ref)))
    assert jnp.allclose(y, ref, atol=1e-2, rtol=1e-2), max_err

    print("KERNEL_OK")
</pallas_src>

<mosaic_0001>
module attributes {stable_mosaic.version = 11 : i64} {
  func.func @_mix_channel_kernel(%arg0: i32, %arg1: memref<2x32x256xf32, #tpu.memory_space<vmem>>, %arg2: memref<64x32xbf16, #tpu.memory_space<vmem>>, %arg3: memref<64x1xf32, #tpu.memory_space<vmem>>, %arg4: memref<64x4xf32, #tpu.memory_space<vmem>>, %arg5: memref<1x4xf32, #tpu.memory_space<vmem>>, %arg6: memref<64x4xf32, #tpu.memory_space<vmem>>, %arg7: memref<64x1xf32, #tpu.memory_space<vmem>>, %arg8: memref<32x64xbf16, #tpu.memory_space<vmem>>, %arg9: memref<32x1xf32, #tpu.memory_space<vmem>>, %arg10: memref<2x32x256xf32, #tpu.memory_space<vmem>>) attributes {dimension_semantics = [#tpu.dimension_semantics<parallel>], iteration_bounds = array<i64: 2>, scalar_prefetch = 0 : i64, scratch_operands = 0 : i64, tpu.core_type = #tpu.core_type<tc>, window_params = [{transform_indices = @transform_0, window_bounds = array<i64: 2, 32, 256>}, {pipeline_mode = #tpu.pipeline_mode<synchronous>, transform_indices = @transform_1, window_bounds = array<i64: 64, 32>}, {pipeline_mode = #tpu.pipeline_mode<synchronous>, transform_indices = @transform_2, window_bounds = array<i64: 64, 1>}, {pipeline_mode = #tpu.pipeline_mode<synchronous>, transform_indices = @transform_3, window_bounds = array<i64: 64, 4>}, {pipeline_mode = #tpu.pipeline_mode<synchronous>, transform_indices = @transform_4, window_bounds = array<i64: 1, 4>}, {pipeline_mode = #tpu.pipeline_mode<synchronous>, transform_indices = @transform_5, window_bounds = array<i64: 64, 4>}, {pipeline_mode = #tpu.pipeline_mode<synchronous>, transform_indices = @transform_6, window_bounds = array<i64: 64, 1>}, {pipeline_mode = #tpu.pipeline_mode<synchronous>, transform_indices = @transform_7, window_bounds = array<i64: 32, 64>}, {pipeline_mode = #tpu.pipeline_mode<synchronous>, transform_indices = @transform_8, window_bounds = array<i64: 32, 1>}, {transform_indices = @transform_9, window_bounds = array<i64: 2, 32, 256>}]} {
    %c0 = arith.constant 0 : index
    %c0_0 = arith.constant 0 : index
    %0 = vector.load %arg2[%c0, %c0_0] : memref<64x32xbf16, #tpu.memory_space<vmem>>, vector<64x32xbf16>
    %c0_1 = arith.constant 0 : index
    %c0_2 = arith.constant 0 : index
    %1 = vector.load %arg8[%c0_1, %c0_2] : memref<32x64xbf16, #tpu.memory_space<vmem>>, vector<32x64xbf16>
    %c0_3 = arith.constant 0 : index
    %c0_4 = arith.constant 0 : index
    %2 = vector.load %arg3[%c0_3, %c0_4] : memref<64x1xf32, #tpu.memory_space<vmem>>, vector<64x1xf32>
    %c0_5 = arith.constant 0 : index
    %c0_6 = arith.constant 0 : index
    %3 = vector.load %arg9[%c0_5, %c0_6] : memref<32x1xf32, #tpu.memory_space<vmem>>, vector<32x1xf32>
    %c0_7 = arith.constant 0 : index
    %c0_8 = arith.constant 0 : index
    %4 = vector.load %arg4[%c0_7, %c0_8] : memref<64x4xf32, #tpu.memory_space<vmem>>, vector<64x4xf32>
    %c0_9 = arith.constant 0 : index
    %c0_10 = arith.constant 0 : index
    %5 = vector.load %arg5[%c0_9, %c0_10] : memref<1x4xf32, #tpu.memory_space<vmem>>, vector<1x4xf32>
    %c0_11 = arith.constant 0 : index
    %c0_12 = arith.constant 0 : index
    %6 = vector.load %arg6[%c0_11, %c0_12] : memref<64x4xf32, #tpu.memory_space<vmem>>, vector<64x4xf32>
    %c0_13 = arith.constant 0 : index
    %c0_14 = arith.constant 0 : index
    %7 = vector.load %arg7[%c0_13, %c0_14] : memref<64x1xf32, #tpu.memory_space<vmem>>, vector<64x1xf32>
    %c0_i32 = arith.constant 0 : i32
    %8 = arith.index_cast %c0_i32 : i32 to index
    %c0_15 = arith.constant 0 : index
    %c0_16 = arith.constant 0 : index
    %9 = vector.load %arg1[%8, %c0_15, %c0_16] : memref<2x32x256xf32, #tpu.memory_space<vmem>>, vector<1x32x256xf32>
    %10 = vector.shape_cast %9 : vector<1x32x256xf32> to vector<32x256xf32>
    %11 = arith.truncf %10 : vector<32x256xf32> to vector<32x256xbf16>
    %cst = arith.constant dense<0.000000e+00> : vector<64x256xf32>
    %12 = tpu.matmul %0, %11, %cst {dimension_numbers = #tpu.dot_dimension_numbers<[1], [0], [0], [1], [0, 0, 1, 1], [], []>} : vector<64x32xbf16>, vector<32x256xbf16>, vector<64x256xf32> -> vector<64x256xf32>
    %13 = vector.broadcast %2 : vector<64x1xf32> to vector<64x256xf32>
    %14 = arith.addf %12, %13 : vector<64x256xf32>
    %cst_17 = arith.constant 5.000000e-01 : f32
    %15 = vector.broadcast %cst_17 : f32 to vector<64x256xf32>
    %16 = arith.mulf %15, %14 : vector<64x256xf32>
    %cst_18 = arith.constant 4.471500e-02 : f32
    %17 = vector.broadcast %cst_18 : f32 to vector<64x256xf32>
    %18 = arith.mulf %17, %14 : vector<64x256xf32>
    %19 = arith.mulf %18, %14 : vector<64x256xf32>
    %20 = arith.mulf %19, %14 : vector<64x256xf32>
    %21 = arith.addf %14, %20 : vector<64x256xf32>
    %cst_19 = arith.constant 0.797884583 : f32
    %22 = vector.broadcast %cst_19 : f32 to vector<64x256xf32>
    %23 = arith.mulf %22, %21 : vector<64x256xf32>
    %24 = math.tanh %23 : vector<64x256xf32>
    %cst_20 = arith.constant 1.000000e+00 : f32
    %25 = vector.broadcast %cst_20 : f32 to vector<64x256xf32>
    %26 = arith.addf %25, %24 : vector<64x256xf32>
    %27 = arith.mulf %16, %26 : vector<64x256xf32>
    %cst_21 = arith.constant dense<0.000000e+00> : vector<64xf32>
    %28 = vector.multi_reduction <add>, %27, %cst_21 [1] : vector<64x256xf32> to vector<64xf32>
    %29 = vector.shape_cast %28 : vector<64xf32> to vector<64x1xf32>
    %cst_22 = arith.constant 2.560000e+02 : f32
    %30 = vector.broadcast %cst_22 : f32 to vector<64x1xf32>
    %31 = arith.divf %29, %30 : vector<64x1xf32>
    %32 = vector.broadcast %31 : vector<64x1xf32> to vector<64x4xf32>
    %33 = arith.mulf %4, %32 : vector<64x4xf32>
    %cst_23 = arith.constant dense<0.000000e+00> : vector<4xf32>
    %34 = vector.multi_reduction <add>, %33, %cst_23 [0] : vector<64x4xf32> to vector<4xf32>
    %35 = vector.shape_cast %34 : vector<4xf32> to vector<1x4xf32>
    %36 = arith.addf %35, %5 : vector<1x4xf32>
    %cst_24 = arith.constant 0.000000e+00 : f32
    %37 = vector.broadcast %cst_24 : f32 to vector<1x4xf32>
    %38 = arith.maximumf %36, %37 : vector<1x4xf32>
    %39 = vector.broadcast %38 : vector<1x4xf32> to vector<64x4xf32>
    %40 = arith.mulf %6, %39 : vector<64x4xf32>
    %cst_25 = arith.constant dense<0.000000e+00> : vector<64xf32>
    %41 = vector.multi_reduction <add>, %40, %cst_25 [1] : vector<64x4xf32> to vector<64xf32>
    %42 = vector.shape_cast %41 : vector<64xf32> to vector<64x1xf32>
    %43 = arith.addf %42, %7 : vector<64x1xf32>
    %44 = arith.negf %43 : vector<64x1xf32>
    %45 = math.exp %44 : vector<64x1xf32>
    %cst_26 = arith.constant 1.000000e+00 : f32
    %46 = vector.broadcast %cst_26 : f32 to vector<64x1xf32>
    %47 = arith.addf %46, %45 : vector<64x1xf32>
    %48 = arith.divf %46, %47 : vector<64x1xf32>
    %49 = vector.broadcast %48 : vector<64x1xf32> to vector<64x256xf32>
    %50 = arith.mulf %27, %49 : vector<64x256xf32>
    %51 = arith.truncf %50 : vector<64x256xf32> to vector<64x256xbf16>
    %cst_27 = arith.constant dense<0.000000e+00> : vector<32x256xf32>
    %52 = tpu.matmul %1, %51, %cst_27 {dimension_numbers = #tpu.dot_dimension_numbers<[1], [0], [0], [1], [0, 0, 1, 1], [], []>} : vector<32x64xbf16>, vector<64x256xbf16>, vector<32x256xf32> -> vector<32x256xf32>
    %53 = vector.broadcast %3 : vector<32x1xf32> to vector<32x256xf32>
    %54 = arith.addf %52, %53 : vector<32x256xf32>
    %cst_28 = arith.constant 5.000000e-01 : f32
    %55 = vector.broadcast %cst_28 : f32 to vector<32x256xf32>
    %56 = arith.mulf %55, %54 : vector<32x256xf32>
    %cst_29 = arith.constant 4.471500e-02 : f32
    %57 = vector.broadcast %cst_29 : f32 to vector<32x256xf32>
    %58 = arith.mulf %57, %54 : vector<32x256xf32>
    %59 = arith.mulf %58, %54 : vector<32x256xf32>
    %60 = arith.mulf %59, %54 : vector<32x256xf32>
    %61 = arith.addf %54, %60 : vector<32x256xf32>
    %cst_30 = arith.constant 0.797884583 : f32
    %62 = vector.broadcast %cst_30 : f32 to vector<32x256xf32>
    %63 = arith.mulf %62, %61 : vector<32x256xf32>
    %64 = math.tanh %63 : vector<32x256xf32>
    %cst_31 = arith.constant 1.000000e+00 : f32
    %65 = vector.broadcast %cst_31 : f32 to vector<32x256xf32>
    %66 = arith.addf %65, %64 : vector<32x256xf32>
    %67 = arith.mulf %56, %66 : vector<32x256xf32>
    %68 = arith.addf %67, %10 : vector<32x256xf32>
    %69 = arith.index_cast %c0_i32 : i32 to index
    %c0_32 = arith.constant 0 : index
    %c0_33 = arith.constant 0 : index
    %70 = vector.load %arg10[%69, %c0_32, %c0_33] : memref<2x32x256xf32, #tpu.memory_space<vmem>>, vector<1x32x256xf32>
    %71 = vector.shape_cast %70 : vector<1x32x256xf32> to vector<32x256xf32>
    %72 = vector.shape_cast %68 : vector<32x256xf32> to vector<1x32x256xf32>
    tpu.vector_store %arg10[%69, %c0_32, %c0_33], %72 {strides = array<i32>} : memref<2x32x256xf32, #tpu.memory_space<vmem>>, vector<1x32x256xf32>,
    %c1_i32 = arith.constant 1 : i32
    %73 = arith.index_cast %c1_i32 : i32 to index
    %c0_34 = arith.constant 0 : index
    %c0_35 = arith.constant 0 : index
    %74 = vector.load %arg1[%73, %c0_34, %c0_35] : memref<2x32x256xf32, #tpu.memory_space<vmem>>, vector<1x32x256xf32>
    %75 = vector.shape_cast %74 : vector<1x32x256xf32> to vector<32x256xf32>
    %76 = arith.truncf %75 : vector<32x256xf32> to vector<32x256xbf16>
    %cst_36 = arith.constant dense<0.000000e+00> : vector<64x256xf32>
    %77 = tpu.matmul %0, %76, %cst_36 {dimension_numbers = #tpu.dot_dimension_numbers<[1], [0], [0], [1], [0, 0, 1, 1], [], []>} : vector<64x32xbf16>, vector<32x256xbf16>, vector<64x256xf32> -> vector<64x256xf32>
    %78 = vector.broadcast %2 : vector<64x1xf32> to vector<64x256xf32>
    %79 = arith.addf %77, %78 : vector<64x256xf32>
    %cst_37 = arith.constant 5.000000e-01 : f32
    %80 = vector.broadcast %cst_37 : f32 to vector<64x256xf32>
    %81 = arith.mulf %80, %79 : vector<64x256xf32>
    %cst_38 = arith.constant 4.471500e-02 : f32
    %82 = vector.broadcast %cst_38 : f32 to vector<64x256xf32>
    %83 = arith.mulf %82, %79 : vector<64x256xf32>
    %84 = arith.mulf %83, %79 : vector<64x256xf32>
    %85 = arith.mulf %84, %79 : vector<64x256xf32>
    %86 = arith.addf %79, %85 : vector<64x256xf32>
    %cst_39 = arith.constant 0.797884583 : f32
    %87 = vector.broadcast %cst_39 : f32 to vector<64x256xf32>
    %88 = arith.mulf %87, %86 : vector<64x256xf32>
    %89 = math.tanh %88 : vector<64x256xf32>
    %cst_40 = arith.constant 1.000000e+00 : f32
    %90 = vector.broadcast %cst_40 : f32 to vector<64x256xf32>
    %91 = arith.addf %90, %89 : vector<64x256xf32>
    %92 = arith.mulf %81, %91 : vector<64x256xf32>
    %cst_41 = arith.constant dense<0.000000e+00> : vector<64xf32>
    %93 = vector.multi_reduction <add>, %92, %cst_41 [1] : vector<64x256xf32> to vector<64xf32>
    %94 = vector.shape_cast %93 : vector<64xf32> to vector<64x1xf32>
    %cst_42 = arith.constant 2.560000e+02 : f32
    %95 = vector.broadcast %cst_42 : f32 to vector<64x1xf32>
    %96 = arith.divf %94, %95 : vector<64x1xf32>
    %97 = vector.broadcast %96 : vector<64x1xf32> to vector<64x4xf32>
    %98 = arith.mulf %4, %97 : vector<64x4xf32>
    %cst_43 = arith.constant dense<0.000000e+00> : vector<4xf32>
    %99 = vector.multi_reduction <add>, %98, %cst_43 [0] : vector<64x4xf32> to vector<4xf32>
    %100 = vector.shape_cast %99 : vector<4xf32> to vector<1x4xf32>
    %101 = arith.addf %100, %5 : vector<1x4xf32>
    %cst_44 = arith.constant 0.000000e+00 : f32
    %102 = vector.broadcast %cst_44 : f32 to vector<1x4xf32>
    %103 = arith.maximumf %101, %102 : vector<1x4xf32>
    %104 = vector.broadcast %103 : vector<1x4xf32> to vector<64x4xf32>
    %105 = arith.mulf %6, %104 : vector<64x4xf32>
    %cst_45 = arith.constant dense<0.000000e+00> : vector<64xf32>
    %106 = vector.multi_reduction <add>, %105, %cst_45 [1] : vector<64x4xf32> to vector<64xf32>
    %107 = vector.shape_cast %106 : vector<64xf32> to vector<64x1xf32>
    %108 = arith.addf %107, %7 : vector<64x1xf32>
    %109 = arith.negf %108 : vector<64x1xf32>
    %110 = math.exp %109 : vector<64x1xf32>
    %cst_46 = arith.constant 1.000000e+00 : f32
    %111 = vector.broadcast %cst_46 : f32 to vector<64x1xf32>
    %112 = arith.addf %111, %110 : vector<64x1xf32>
    %113 = arith.divf %111, %112 : vector<64x1xf32>
    %114 = vector.broadcast %113 : vector<64x1xf32> to vector<64x256xf32>
    %115 = arith.mulf %92, %114 : vector<64x256xf32>
    %116 = arith.truncf %115 : vector<64x256xf32> to vector<64x256xbf16>
    %cst_47 = arith.constant dense<0.000000e+00> : vector<32x256xf32>
    %117 = tpu.matmul %1, %116, %cst_47 {dimension_numbers = #tpu.dot_dimension_numbers<[1], [0], [0], [1], [0, 0, 1, 1], [], []>} : vector<32x64xbf16>, vector<64x256xbf16>, vector<32x256xf32> -> vector<32x256xf32>
    %118 = vector.broadcast %3 : vector<32x1xf32> to vector<32x256xf32>
    %119 = arith.addf %117, %118 : vector<32x256xf32>
    %cst_48 = arith.constant 5.000000e-01 : f32
    %120 = vector.broadcast %cst_48 : f32 to vector<32x256xf32>
    %121 = arith.mulf %120, %119 : vector<32x256xf32>
    %cst_49 = arith.constant 4.471500e-02 : f32
    %122 = vector.broadcast %cst_49 : f32 to vector<32x256xf32>
    %123 = arith.mulf %122, %119 : vector<32x256xf32>
    %124 = arith.mulf %123, %119 : vector<32x256xf32>
    %125 = arith.mulf %124, %119 : vector<32x256xf32>
    %126 = arith.addf %119, %125 : vector<32x256xf32>
    %cst_50 = arith.constant 0.797884583 : f32
    %127 = vector.broadcast %cst_50 : f32 to vector<32x256xf32>
    %128 = arith.mulf %127, %126 : vector<32x256xf32>
    %129 = math.tanh %128 : vector<32x256xf32>
    %cst_51 = arith.constant 1.000000e+00 : f32
    %130 = vector.broadcast %cst_51 : f32 to vector<32x256xf32>
    %131 = arith.addf %130, %129 : vector<32x256xf32>
    %132 = arith.mulf %121, %131 : vector<32x256xf32>
    %133 = arith.addf %132, %75 : vector<32x256xf32>
    %134 = arith.index_cast %c1_i32 : i32 to index
    %c0_52 = arith.constant 0 : index
    %c0_53 = arith.constant 0 : index
    %135 = vector.load %arg10[%134, %c0_52, %c0_53] : memref<2x32x256xf32, #tpu.memory_space<vmem>>, vector<1x32x256xf32>
    %136 = vector.shape_cast %135 : vector<1x32x256xf32> to vector<32x256xf32>
    %137 = vector.shape_cast %133 : vector<32x256xf32> to vector<1x32x256xf32>
    tpu.vector_store %arg10[%134, %c0_52, %c0_53], %137 {strides = array<i32>} : memref<2x32x256xf32, #tpu.memory_space<vmem>>, vector<1x32x256xf32>,
    %c2_i32 = arith.constant 2 : i32
    return
  }
  func.func @transform_0(%arg0: i32) -> (i32, i32, i32) {
    %c0_i32 = arith.constant 0 : i32
    %c0_i32_0 = arith.constant 0 : i32
    %c0_i32_1 = arith.constant 0 : i32
    return %arg0, %c0_i32, %c0_i32_0 : i32, i32, i32
  }
  func.func @transform_1(%arg0: i32) -> (i32, i32) {
    %c0_i32 = arith.constant 0 : i32
    %c0_i32_0 = arith.constant 0 : i32
    %c0_i32_1 = arith.constant 0 : i32
    return %c0_i32, %c0_i32_0 : i32, i32
  }
  func.func @transform_2(%arg0: i32) -> (i32, i32) {
    %c0_i32 = arith.constant 0 : i32
    %c0_i32_0 = arith.constant 0 : i32
    %c0_i32_1 = arith.constant 0 : i32
    return %c0_i32, %c0_i32_0 : i32, i32
  }
  func.func @transform_3(%arg0: i32) -> (i32, i32) {
    %c0_i32 = arith.constant 0 : i32
    %c0_i32_0 = arith.constant 0 : i32
    %c0_i32_1 = arith.constant 0 : i32
    return %c0_i32, %c0_i32_0 : i32, i32
  }
  func.func @transform_4(%arg0: i32) -> (i32, i32) {
    %c0_i32 = arith.constant 0 : i32
    %c0_i32_0 = arith.constant 0 : i32
    %c0_i32_1 = arith.constant 0 : i32
    return %c0_i32, %c0_i32_0 : i32, i32
  }
  func.func @transform_5(%arg0: i32) -> (i32, i32) {
    %c0_i32 = arith.constant 0 : i32
    %c0_i32_0 = arith.constant 0 : i32
    %c0_i32_1 = arith.constant 0 : i32
    return %c0_i32, %c0_i32_0 : i32, i32
  }
  func.func @transform_6(%arg0: i32) -> (i32, i32) {
    %c0_i32 = arith.constant 0 : i32
    %c0_i32_0 = arith.constant 0 : i32
    %c0_i32_1 = arith.constant 0 : i32
    return %c0_i32, %c0_i32_0 : i32, i32
  }
  func.func @transform_7(%arg0: i32) -> (i32, i32) {
    %c0_i32 = arith.constant 0 : i32
    %c0_i32_0 = arith.constant 0 : i32
    %c0_i32_1 = arith.constant 0 : i32
    return %c0_i32, %c0_i32_0 : i32, i32
  }
  func.func @transform_8(%arg0: i32) -> (i32, i32) {
    %c0_i32 = arith.constant 0 : i32
    %c0_i32_0 = arith.constant 0 : i32
    %c0_i32_1 = arith.constant 0 : i32
    return %c0_i32, %c0_i32_0 : i32, i32
  }
  func.func @transform_9(%arg0: i32) -> (i32, i32, i32) {
    %c0_i32 = arith.constant 0 : i32
    %c0_i32_0 = arith.constant 0 : i32
    %c0_i32_1 = arith.constant 0 : i32
    return %arg0, %c0_i32, %c0_i32_0 : i32, i32, i32
  }
}

</mosaic_0001>

<llo_original>
// kernel: mix_channel.1
$region0: #{mix_channel.1}
  #allocation0 [shape = 'u32[]', space=smem, size = 0x4, offset = 0x4, fixed_abs, tag = 'smem constant byte address 0x4 - core index']
  #allocation1 [shape = 'u32[72,128]{1,0:T(1,128)}', space=vmem, size = 0x9000, scoped, tag = 'internal scratch']
  %s0 = inlined_call_operand.vmem [shape: f32[4,32,256], index: 0, kind: input, shape index: {}]
  %s1 = inlined_call_operand.vmem [shape: bf16[64,32], index: 1, kind: input, shape index: {}]
  %s2 = inlined_call_operand.vmem [shape: f32[64,1], index: 2, kind: input, shape index: {}]
  %s3 = inlined_call_operand.vmem [shape: f32[64,4], index: 3, kind: input, shape index: {}]
  %s4 = inlined_call_operand.vmem [shape: f32[1,4], index: 4, kind: input, shape index: {}]
  %s5 = inlined_call_operand.vmem [shape: f32[64,4], index: 5, kind: input, shape index: {}]
  %s6 = inlined_call_operand.vmem [shape: f32[64,1], index: 6, kind: input, shape index: {}]
  %s7 = inlined_call_operand.vmem [shape: bf16[32,64], index: 7, kind: input, shape index: {}]
  %s8 = inlined_call_operand.vmem [shape: f32[32,1], index: 8, kind: input, shape index: {}]
  %s9 = inlined_call_operand.vmem [shape: f32[4,32,256], index: 9, kind: output, shape index: {}]
  %s10 = sld [smem:[#allocation0]]
  $region69: #{mix_channel.1} parent=0
    _
  %s12 = ssub.s32 1, %s10
  %s13 = scalar_select 0, %s12, %s10
  loop: start=0, step=1, limit=4
  $region2: #{mix_channel.1} parent=0 // loop_pre_header
    _
  $region3: #{mix_channel.1} parent=0 // loop_header
    %s15 = sphi 0, %s19
    %p16 = scmp.ge.s32.totalorder %s15, 4
    %s25 = sphi 0, %s27
    %s28 = sphi 0, %s25
    %s29 = sphi 0, %s28
    %s45 = sphi 0, %s29
    %s49 = sphi 0, %s49
    %s51 = sphi 0, %s49
    %s52 = sphi 0, %s51
    %s66 = sphi 0, %s52
    %s70 = sphi 0, %s70
    %s72 = sphi 0, %s70
    %s73 = sphi 0, %s72
    %s87 = sphi 0, %s73
    %s91 = sphi 0, %s91
    %s93 = sphi 0, %s91
    %s94 = sphi 0, %s93
    %s108 = sphi 0, %s94
    %s112 = sphi 0, %s112
    %s114 = sphi 0, %s112
    %s115 = sphi 0, %s114
    %s129 = sphi 0, %s115
    %s133 = sphi 0, %s133
    %s135 = sphi 0, %s133
    %s136 = sphi 0, %s135
    %s150 = sphi 0, %s136
    %s154 = sphi 0, %s154
    %s156 = sphi 0, %s154
    %s157 = sphi 0, %s156
    %s171 = sphi 0, %s157
    %s175 = sphi 0, %s175
    %s177 = sphi 0, %s175
    %s178 = sphi 0, %s177
    %s192 = sphi 0, %s178
    %s196 = sphi 0, %s196
    %s198 = sphi 0, %s196
    %s199 = sphi 0, %s198
    %s213 = sphi 0, %s199
    %s219 = sphi 0, %s221
    %s222 = sphi 0, %s219
    %s223 = sphi 0, %s222
    %s239 = sphi 0, %s223
  $region4: #{mix_channel.1} parent=0 // loop_header_branch
    %18 = sbr.rel (%p16) target = $region8
  $region5: #{mix_channel.1} parent=0 // loop_body
    %s20 = ssub.s32 %s15, 1
    %s21 = ssub.s32 %s15, 2
    %s22 = sadd.s32 %s15, 1
    %s23 = ssub.s32 %s15, %s22
    %p24 = scmp.eq.s32.totalorder %s23, 0
    %s26 = sadd.s32 %s25, 1
    %s27 = scalar_select %p24, %s25, %s26
    %p30 = pneg %p24
    %p31 = scmp.eq.s32.totalorder %s15, 1
    %p32 = por %p30, %p31
    %p33 = scmp.ne.s32.totalorder %s25, %s28
    %p34 = scmp.eq.s32.totalorder %s15, 0
    %p35 = por %p33, %p34
    %p36 = scmp.ne.s32.totalorder %s25, %s28
    %p37 = scmp.eq.s32.totalorder %s20, 1
    %p38 = por %p36, %p37
    %p39 = scmp.ne.s32.totalorder %s28, %s29
    %p40 = scmp.eq.s32.totalorder %s20, 0
    %p41 = por %p39, %p40
    %p42 = scmp.ne.s32.totalorder %s28, %s29
    %p43 = scmp.eq.s32.totalorder %s21, 1
    %p44 = por %p42, %p43
    %p46 = scmp.ne.s32.totalorder %s29, %s45
    %p47 = scmp.eq.s32.totalorder %s21, 0
    %p48 = por %p46, %p47
    %s50 = sadd.s32 %s49, 1
    %p53 = scmp.eq.s32.totalorder %s15, 1
    %p54 = scmp.ne.s32.totalorder %s49, %s51
    %p55 = scmp.eq.s32.totalorder %s15, 0
    %p56 = por %p54, %p55
    %p57 = scmp.ne.s32.totalorder %s49, %s51
    %p58 = scmp.eq.s32.totalorder %s20, 1
    %p59 = por %p57, %p58
    %p60 = scmp.ne.s32.totalorder %s51, %s52
    %p61 = scmp.eq.s32.totalorder %s20, 0
    %p62 = por %p60, %p61
    %p63 = scmp.ne.s32.totalorder %s51, %s52
    %p64 = scmp.eq.s32.totalorder %s21, 1
    %p65 = por %p63, %p64
    %p67 = scmp.ne.s32.totalorder %s52, %s66
    %p68 = scmp.eq.s32.totalorder %s21, 0
    %p69 = por %p67, %p68
    %s71 = sadd.s32 %s70, 1
    %p74 = scmp.eq.s32.totalorder %s15, 1
    %p75 = scmp.ne.s32.totalorder %s70, %s72
    %p76 = scmp.eq.s32.totalorder %s15, 0
    %p77 = por %p75, %p76
    %p78 = scmp.ne.s32.totalorder %s70, %s72
    %p79 = scmp.eq.s32.totalorder %s20, 1
    %p80 = por %p78, %p79
    %p81 = scmp.ne.s32.totalorder %s72, %s73
    %p82 = scmp.eq.s32.totalorder %s20, 0
    %p83 = por %p81, %p82
    %p84 = scmp.ne.s32.totalorder %s72, %s73
    %p85 = scmp.eq.s32.totalorder %s21, 1
    %p86 = por %p84, %p85
    %p88 = scmp.ne.s32.totalorder %s73, %s87
    %p89 = scmp.eq.s32.totalorder %s21, 0
    %p90 = por %p88, %p89
    %s92 = sadd.s32 %s91, 1
    %p95 = scmp.eq.s32.totalorder %s15, 1
    %p96 = scmp.ne.s32.totalorder %s91, %s93
    %p97 = scmp.eq.s32.totalorder %s15, 0
    %p98 = por %p96, %p97
    %p99 = scmp.ne.s32.totalorder %s91, %s93
    %p100 = scmp.eq.s32.totalorder %s20, 1
    %p101 = por %p99, %p100
    %p102 = scmp.ne.s32.totalorder %s93, %s94
    %p103 = scmp.eq.s32.totalorder %s20, 0
    %p104 = por %p102, %p103
    %p105 = scmp.ne.s32.totalorder %s93, %s94
    %p106 = scmp.eq.s32.totalorder %s21, 1
    %p107 = por %p105, %p106
    %p109 = scmp.ne.s32.totalorder %s94, %s108
    %p110 = scmp.eq.s32.totalorder %s21, 0
    %p111 = por %p109, %p110
    %s113 = sadd.s32 %s112, 1
    %p116 = scmp.eq.s32.totalorder %s15, 1
    %p117 = scmp.ne.s32.totalorder %s112, %s114
    %p118 = scmp.eq.s32.totalorder %s15, 0
    %p119 = por %p117, %p118
    %p120 = scmp.ne.s32.totalorder %s112, %s114
    %p121 = scmp.eq.s32.totalorder %s20, 1
    %p122 = por %p120, %p121
    %p123 = scmp.ne.s32.totalorder %s114, %s115
    %p124 = scmp.eq.s32.totalorder %s20, 0
    %p125 = por %p123, %p124
    %p126 = scmp.ne.s32.totalorder %s114, %s115
    %p127 = scmp.eq.s32.totalorder %s21, 1
    %p128 = por %p126, %p127
    %p130 = scmp.ne.s32.totalorder %s115, %s129
    %p131 = scmp.eq.s32.totalorder %s21, 0
    %p132 = por %p130, %p131
    %s134 = sadd.s32 %s133, 1
    %p137 = scmp.eq.s32.totalorder %s15, 1
    %p138 = scmp.ne.s32.totalorder %s133, %s135
    %p139 = scmp.eq.s32.totalorder %s15, 0
    %p140 = por %p138, %p139
    %p141 = scmp.ne.s32.totalorder %s133, %s135
    %p142 = scmp.eq.s32.totalorder %s20, 1
    %p143 = por %p141, %p142
    %p144 = scmp.ne.s32.totalorder %s135, %s136
    %p145 = scmp.eq.s32.totalorder %s20, 0
    %p146 = por %p144, %p145
    %p147 = scmp.ne.s32.totalorder %s135, %s136
    %p148 = scmp.eq.s32.totalorder %s21, 1
    %p149 = por %p147, %p148
    %p151 = scmp.ne.s32.totalorder %s136, %s150
    %p152 = scmp.eq.s32.totalorder %s21, 0
    %p153 = por %p151, %p152
    %s155 = sadd.s32 %s154, 1
    %p158 = scmp.eq.s32.totalorder %s15, 1
    %p159 = scmp.ne.s32.totalorder %s154, %s156
    %p160 = scmp.eq.s32.totalorder %s15, 0
    %p161 = por %p159, %p160
    %p162 = scmp.ne.s32.totalorder %s154, %s156
    %p163 = scmp.eq.s32.totalorder %s20, 1
    %p164 = por %p162, %p163
    %p165 = scmp.ne.s32.totalorder %s156, %s157
    %p166 = scmp.eq.s32.totalorder %s20, 0
    %p167 = por %p165, %p166
    %p168 = scmp.ne.s32.totalorder %s156, %s157
    %p169 = scmp.eq.s32.totalorder %s21, 1
    %p170 = por %p168, %p169
    %p172 = scmp.ne.s32.totalorder %s157, %s171
    %p173 = scmp.eq.s32.totalorder %s21, 0
    %p174 = por %p172, %p173
    %s176 = sadd.s32 %s175, 1
    %p179 = scmp.eq.s32.totalorder %s15, 1
    %p180 = scmp.ne.s32.totalorder %s175, %s177
    %p181 = scmp.eq.s32.totalorder %s15, 0
    %p182 = por %p180, %p181
    %p183 = scmp.ne.s32.totalorder %s175, %s177
    %p184 = scmp.eq.s32.totalorder %s20, 1
    %p185 = por %p183, %p184
    %p186 = scmp.ne.s32.totalorder %s177, %s178
    %p187 = scmp.eq.s32.totalorder %s20, 0
    %p188 = por %p186, %p187
    %p189 = scmp.ne.s32.totalorder %s177, %s178
    %p190 = scmp.eq.s32.totalorder %s21, 1
    %p191 = por %p189, %p190
    %p193 = scmp.ne.s32.totalorder %s178, %s192
    %p194 = scmp.eq.s32.totalorder %s21, 0
    %p195 = por %p193, %p194
    %s197 = sadd.s32 %s196, 1
    %p200 = scmp.eq.s32.totalorder %s15, 1
    %p201 = scmp.ne.s32.totalorder %s196, %s198
    %p202 = scmp.eq.s32.totalorder %s15, 0
    %p203 = por %p201, %p202
    %p204 = scmp.ne.s32.totalorder %s196, %s198
    %p205 = scmp.eq.s32.totalorder %s20, 1
    %p206 = por %p204, %p205
    %p207 = scmp.ne.s32.totalorder %s198, %s199
    %p208 = scmp.eq.s32.totalorder %s20, 0
    %p209 = por %p207, %p208
    %p210 = scmp.ne.s32.totalorder %s198, %s199
    %p211 = scmp.eq.s32.totalorder %s21, 1
    %p212 = por %p210, %p211
    %p214 = scmp.ne.s32.totalorder %s199, %s213
    %p215 = scmp.eq.s32.totalorder %s21, 0
    %p216 = por %p214, %p215
    %s217 = ssub.s32 %s15, %s22
    %p218 = scmp.eq.s32.totalorder %s217, 0
    %s220 = sadd.s32 %s219, 1
    %s221 = scalar_select %p218, %s219, %s220
    %p224 = pneg %p218
    %p225 = scmp.eq.s32.totalorder %s15, 1
    %p226 = por %p224, %p225
    %p227 = scmp.ne.s32.totalorder %s219, %s222
    %p228 = scmp.eq.s32.totalorder %s15, 0
    %p229 = por %p227, %p228
    %p230 = scmp.ne.s32.totalorder %s219, %s222
    %p231 = scmp.eq.s32.totalorder %s20, 1
    %p232 = por %p230, %p231
    %p233 = scmp.ne.s32.totalorder %s222, %s223
    %p234 = scmp.eq.s32.totalorder %s20, 0
    %p235 = por %p233, %p234
    %p236 = scmp.ne.s32.totalorder %s222, %s223
    %p237 = scmp.eq.s32.totalorder %s21, 1
    %p238 = por %p236, %p237
    %p240 = scmp.ne.s32.totalorder %s223, %s239
    %p241 = scmp.eq.s32.totalorder %s21, 0
    %p242 = por %p240, %p241
    %p243 = scmp.le.s32.totalorder 1, %s15
    %p244 = scmp.lt.s32.totalorder %s15, 3
    %p245 = pnand %p243, %p244
    %p246 = pneg %p245
    // Predicated region
    $region9: #{mix_channel.1} parent=5 // pred_check
      _
    $region10: #{mix_channel.1} parent=5 // pred_check_branch
      %248 = sbr.rel (%p245) target = $region12
    $region11: #{mix_channel.1} parent=5 // pred_region
      %s249 = ssub.s32 %s15, 1
      // Predicated region
      $region13: #{mix_channel.1} parent=11 // pred_check
        %p250 = pneg %p62
      $region14: #{mix_channel.1} parent=11 // pred_check_branch
        %252 = sbr.rel (%p250) target = $region16
      $region15: #{mix_channel.1} parent=11 // pred_region
        _
      $region16: #{mix_channel.1} parent=11 // pred_fallthru
        _
      // Predicated region
      $region17: #{mix_channel.1} parent=11 // pred_check
        %p253 = pneg %p83
      $region18: #{mix_channel.1} parent=11 // pred_check_branch
        %255 = sbr.rel (%p253) target = $region20
      $region19: #{mix_channel.1} parent=11 // pred_region
        _
      $region20: #{mix_channel.1} parent=11 // pred_fallthru
        _
      // Predicated region
      $region21: #{mix_channel.1} parent=11 // pred_check
        %p256 = pneg %p104
      $region22: #{mix_channel.1} parent=11 // pred_check_branch
        %258 = sbr.rel (%p256) target = $region24
      $region23: #{mix_channel.1} parent=11 // pred_region
        _
      $region24: #{mix_channel.1} parent=11 // pred_fallthru
        _
      // Predicated region
      $region25: #{mix_channel.1} parent=11 // pred_check
        %p259 = pneg %p125
      $region26: #{mix_channel.1} parent=11 // pred_check_branch
        %261 = sbr.rel (%p259) target = $region28
      $region27: #{mix_channel.1} parent=11 // pred_region
        _
      $region28: #{mix_channel.1} parent=11 // pred_fallthru
        _
      // Predicated region
      $region29: #{mix_channel.1} parent=11 // pred_check
        %p262 = pneg %p146
      $region30: #{mix_channel.1} parent=11 // pred_check_branch
        %264 = sbr.rel (%p262) target = $region32
      $region31: #{mix_channel.1} parent=11 // pred_region
        _
      $region32: #{mix_channel.1} parent=11 // pred_fallthru
        _
      // Predicated region
      $region33: #{mix_channel.1} parent=11 // pred_check
        %p265 = pneg %p167
      $region34: #{mix_channel.1} parent=11 // pred_check_branch
        %267 = sbr.rel (%p265) target = $region36
      $region35: #{mix_channel.1} parent=11 // pred_region
        _
      $region36: #{mix_channel.1} parent=11 // pred_fallthru
        _
      // Predicated region
      $region37: #{mix_channel.1} parent=11 // pred_check
        %p268 = pneg %p188
      $region38: #{mix_channel.1} parent=11 // pred_check_branch
        %270 = sbr.rel (%p268) target = $region40
      $region39: #{mix_channel.1} parent=11 // pred_region
        _
      $region40: #{mix_channel.1} parent=11 // pred_fallthru
        _
      // Predicated region
      $region41: #{mix_channel.1} parent=11 // pred_check
        %p271 = pneg %p209
      $region42: #{mix_channel.1} parent=11 // pred_check_branch
        %273 = sbr.rel (%p271) target = $region44
      $region43: #{mix_channel.1} parent=11 // pred_region
        _
      $region44: #{mix_channel.1} parent=11 // pred_fallthru
        _
    $region12: #{mix_channel.1} parent=5 // pred_fallthru
      _
    %p274 = scmp.lt.s32.totalorder %s15, 2
    // Predicated region
    $region45: #{mix_channel.1} parent=5 // pred_check
      %p275 = pneg %p274
    $region46: #{mix_channel.1} parent=5 // pred_check_branch
      %277 = sbr.rel (%p275) target = $region48
    $region47: #{mix_channel.1} parent=5 // pred_region
      // Predicated region
      $region49: #{mix_channel.1} parent=47 // pred_check
        %p278 = pneg %p35
      $region50: #{mix_channel.1} parent=47 // pred_check_branch
        %280 = sbr.rel (%p278) target = $region52
      $region51: #{mix_channel.1} parent=47 // pred_region
        %s281 = smul.u32 2, %s15
        %p282 = scmp.lt.s32.totalorder %s281, 3
        %s283 = scalar_select %p282, %s281, 3
        %s284 = smul.addr %s283, 8
        %s285 = smul.addr %s284, 8
        %s286 = scalar_lea.vmem %s0, %s285
        %s287 = smul.u32 2, %s15
      $region52: #{mix_channel.1} parent=47 // pred_fallthru
        _
    $region48: #{mix_channel.1} parent=5 // pred_fallthru
      _
    %p288 = scmp.le.s32.totalorder 1, %s15
    %p289 = scmp.lt.s32.totalorder %s15, 3
    %p290 = pnand %p288, %p289
    %p291 = pneg %p290
    // Predicated region
    $region53: #{mix_channel.1} parent=5 // pred_check
      _
    $region54: #{mix_channel.1} parent=5 // pred_check_branch
      %293 = sbr.rel (%p290) target = $region56
    $region55: #{mix_channel.1} parent=5 // pred_region
      %s294 = ssub.s32 %s15, 1
      %s295 = smul.u32 2, %s20
      %p296 = scmp.lt.s32.totalorder %s295, 3
      %s297 = scalar_select %p296, %s295, 3
      %s298 = smul.addr %s297, 8
      %s299 = smul.addr %s298, 8
      %s300 = scalar_lea.vmem %s0, %s299
      %p301 = pneg %p41
      %p302 = pneg %p38
      %p303 = pneg %p62
      %p304 = pneg %p59
      %p305 = pneg %p83
      %p306 = pneg %p80
      %p307 = pneg %p104
      %p308 = pneg %p101
      %p309 = pneg %p125
      %p310 = pneg %p122
      %p311 = pneg %p146
      %p312 = pneg %p143
      %p313 = pneg %p167
      %p314 = pneg %p164
      %p315 = pneg %p188
      %p316 = pneg %p185
      %p317 = pneg %p209
      %p318 = pneg %p206
      %p319 = pneg %p235
      %p320 = pneg %p232
      %s321 = smul.u32 2, %s20
      %p322 = scmp.lt.s32.totalorder %s321, 3
      %s323 = scalar_select %p322, %s321, 3
      %s324 = smul.addr %s323, 8
      %s325 = smul.addr %s324, 8
      %s326 = scalar_lea.vmem %s9, %s325
      %s327 = smul.u32 2, %s20
      %p328 = scmp.lt.s32.totalorder %s327, 3
      %s329 = scalar_select %p328, %s327, 3
      %s330 = smul.addr %s329, 8
      %s331 = smul.addr %s330, 8
      %s332 = scalar_lea.vmem %s0, %s331
      %s333 = smul.u32 2, %s20
      %s334 = smul.u32 2, %s20
      %p335 = scmp.lt.s32.totalorder %s334, 3
      %s336 = scalar_select %p335, %s334, 3
      %s337 = smul.addr %s336, 8
      %s338 = smul.addr %s337, 8
      %s339 = scalar_lea.vmem %s9, %s338
      %s340 = smul.u32 2, %s20
      %v342 = vld [vmem:[%s1] sm:$0xf]
      %v343 = vld [vmem:[%s1 + $0x4] sm:$0xf]
      %v344 = vld [vmem:[%s1 + $0x8] sm:$0xf]
      %v345 = vld [vmem:[%s1 + $0xc] sm:$0xf]
      %v346 = vld [vmem:[%s1 + $0x10] sm:$0xf]
      %v347 = vld [vmem:[%s1 + $0x14] sm:$0xf]
      %v348 = vld [vmem:[%s1 + $0x18] sm:$0xf]
      %v349 = vld [vmem:[%s1 + $0x1c] sm:$0xf]
      %v350 = vld [vmem:[%s7] sm:$0xf]
      %v351 = vld [vmem:[%s7 + $0x4] sm:$0xf]
      %v352 = vld [vmem:[%s7 + $0x8] sm:$0xf]
      %v353 = vld [vmem:[%s7 + $0xc] sm:$0xf]
      %v354 = vld [vmem:[%s2] sm:$0xff]
      %v355 = vld [vmem:[%s2 + $0x8] sm:$0xff]
      %v356 = vld [vmem:[%s2 + $0x10] sm:$0xff]
      %v357 = vld [vmem:[%s2 + $0x18] sm:$0xff]
      %v358 = vld [vmem:[%s2 + $0x20] sm:$0xff]
      %v359 = vld [vmem:[%s2 + $0x28] sm:$0xff]
      %v360 = vld [vmem:[%s2 + $0x30] sm:$0xff]
      %v361 = vld [vmem:[%s2 + $0x38] sm:$0xff]
      %v362 = vld [vmem:[%s8] sm:$0xff]
      %v363 = vld [vmem:[%s8 + $0x8] sm:$0xff]
      %v364 = vld [vmem:[%s8 + $0x10] sm:$0xff]
      %v365 = vld [vmem:[%s8 + $0x18] sm:$0xff]
      %v366 = vld [vmem:[%s3] sm:$0xff]
      %v367 = vld [vmem:[%s3 + $0x8] sm:$0xff]
      %v368 = vld [vmem:[%s3 + $0x10] sm:$0xff]
      %v369 = vld [vmem:[%s3 + $0x18] sm:$0xff]
      %v370 = vld [vmem:[%s3 + $0x20] sm:$0xff]
      %v371 = vld [vmem:[%s3 + $0x28] sm:$0xff]
      %v372 = vld [vmem:[%s3 + $0x30] sm:$0xff]
      %v373 = vld [vmem:[%s3 + $0x38] sm:$0xff]
      %v374 = vld [vmem:[%s4] sm:$0x1]
      %v375 = vld [vmem:[%s5] sm:$0xff]
      %v376 = vld [vmem:[%s5 + $0x8] sm:$0xff]
      %v377 = vld [vmem:[%s5 + $0x10] sm:$0xff]
      %v378 = vld [vmem:[%s5 + $0x18] sm:$0xff]
      %v379 = vld [vmem:[%s5 + $0x20] sm:$0xff]
      %v380 = vld [vmem:[%s5 + $0x28] sm:$0xff]
      %v381 = vld [vmem:[%s5 + $0x30] sm:$0xff]
      %v382 = vld [vmem:[%s5 + $0x38] sm:$0xff]
      %v383 = vld [vmem:[%s6] sm:$0xff]
      %v384 = vld [vmem:[%s6 + $0x8] sm:$0xff]
      %v385 = vld [vmem:[%s6 + $0x10] sm:$0xff]
      %v386 = vld [vmem:[%s6 + $0x18] sm:$0xff]
      %v387 = vld [vmem:[%s6 + $0x20] sm:$0xff]
      %v388 = vld [vmem:[%s6 + $0x28] sm:$0xff]
      %v389 = vld [vmem:[%s6 + $0x30] sm:$0xff]
      %v390 = vld [vmem:[%s6 + $0x38] sm:$0xff]
      %v391 = vld [vmem:[%s332] sm:$0xff]
      %v392 = vld [vmem:[%s332 + $0x8] sm:$0xff]
      %v393 = vld [vmem:[%s332 + $0x10] sm:$0xff]
      %v394 = vld [vmem:[%s332 + $0x18] sm:$0xff]
      %v395 = vld [vmem:[%s332 + $0x20] sm:$0xff]
      %v396 = vld [vmem:[%s332 + $0x28] sm:$0xff]
      %v397 = vld [vmem:[%s332 + $0x30] sm:$0xff]
      %v398 = vld [vmem:[%s332 + $0x38] sm:$0xff]
      %v399 = vpack.c.bf16 %v393, %v391
      %v400 = vpack.c.bf16 %v394, %v392
      %v401 = vpack.c.bf16 %v397, %v395
      %v402 = vpack.c.bf16 %v398, %v396
      %404 = vset.pattern.permute.xlu0 0
      %405 = vperm.xlu0 %404, %v354
      %v406 = vpop.permute.xlu0 %405
      %409 = vset.pattern.permute.xlu0 0
      %410 = vperm.xlu0 %409, %v355
      %v411 = vpop.permute.xlu0 %410
      %414 = vset.pattern.permute.xlu0 0
      %415 = vperm.xlu0 %414, %v356
      %v416 = vpop.permute.xlu0 %415
      %419 = vset.pattern.permute.xlu0 0
      %420 = vperm.xlu0 %419, %v357
      %v421 = vpop.permute.xlu0 %420
      %424 = vset.pattern.permute.xlu0 0
      %425 = vperm.xlu0 %424, %v358
      %v426 = vpop.permute.xlu0 %425
      %429 = vset.pattern.permute.xlu0 0
      %430 = vperm.xlu0 %429, %v359
      %v431 = vpop.permute.xlu0 %430
      %434 = vset.pattern.permute.xlu0 0
      %435 = vperm.xlu0 %434, %v360
      %v436 = vpop.permute.xlu0 %435
      %439 = vset.pattern.permute.xlu0 0
      %440 = vperm.xlu0 %439, %v361
      %v441 = vpop.permute.xlu0 %440
      %v451 = vunpack.c.l.b16 %v342
      %v452 = vunpack.c.l.b16 %v343
      %v453 = vunpack.c.l.b16 %v344
      %v454 = vunpack.c.l.b16 %v345
      %v455 = vunpack.c.l.b16 %v346
      %v456 = vunpack.c.l.b16 %v347
      %v457 = vunpack.c.l.b16 %v348
      %v458 = vunpack.c.l.b16 %v349
      %v459 = vpack.c.b16 %v452, %v451
      %v460 = vpack.c.b16 %v454, %v453
      %v461 = vpack.c.b16 %v456, %v455
      %v462 = vpack.c.b16 %v458, %v457
      %vm463 = vcmask 261120
      %v465 = vsel %vm463, %v459, 0
      %v468 = vsel %vm463, %v460, 0
      %v471 = vsel %vm463, %v461, 0
      %v474 = vsel %vm463, %v462, 0
      %476 = vmatpush.bf16.msra.mxu0 0
      %477 = vmatpush.bf16.msra.mxu0 0
      %478 = vmatpush.bf16.msra.mxu0 0
      %479 = vmatpush.bf16.msra.mxu0 0
      %480 = vmatpush.bf16.msra.mxu0 0
      %481 = vmatpush.bf16.msra.mxu0 0
      %482 = vmatpush.bf16.msra.mxu0 %v401
      %483 = vmatpush.bf16.msra.mxu0 %v399
      %484 = vmatmul.bf16.gmra.mxu0 %v465
      %v485 = vpop.f32.mrf.mxu0
      %v486 = vadd.f32 %v406, %v485
      %v487 = vpop.f32.mrf.mxu0
      %v488 = vadd.f32 %v411, %v487
      %489 = vmatmul.bf16.gmra.mxu0 %v468
      %v490 = vpop.f32.mrf.mxu0
      %v491 = vadd.f32 %v416, %v490
      %v492 = vpop.f32.mrf.mxu0
      %v493 = vadd.f32 %v421, %v492
      %494 = vmatmul.bf16.gmra.mxu0 %v471
      %v495 = vpop.f32.mrf.mxu0
      %v496 = vadd.f32 %v426, %v495
      %v497 = vpop.f32.mrf.mxu0
      %v498 = vadd.f32 %v431, %v497
      %499 = vmatmul.bf16.gmra.mxu0 %v474
      %v500 = vpop.f32.mrf.mxu0
      %v501 = vadd.f32 %v436, %v500
      %v502 = vpop.f32.mrf.mxu0
      %v503 = vadd.f32 %v441, %v502
      %504 = vdwg.mxu0
      %505 = vmatpush.bf16.msra.mxu0 0
      %506 = vmatpush.bf16.msra.mxu0 0
      %507 = vmatpush.bf16.msra.mxu0 0
      %508 = vmatpush.bf16.msra.mxu0 0
      %509 = vmatpush.bf16.msra.mxu0 0
      %510 = vmatpush.bf16.msra.mxu0 0
      %511 = vmatpush.bf16.msra.mxu0 %v402
      %512 = vmatpush.bf16.msra.mxu0 %v400
      %513 = vmatmul.bf16.gmra.mxu0 %v465
      %v514 = vpop.f32.mrf.mxu0
      %v515 = vadd.f32 %v406, %v514
      %v516 = vpop.f32.mrf.mxu0
      %v517 = vadd.f32 %v411, %v516
      %518 = vmatmul.bf16.gmra.mxu0 %v468
      %v519 = vpop.f32.mrf.mxu0
      %v520 = vadd.f32 %v416, %v519
      %v521 = vpop.f32.mrf.mxu0
      %v522 = vadd.f32 %v421, %v521
      %523 = vmatmul.bf16.gmra.mxu0 %v471
      %v524 = vpop.f32.mrf.mxu0
      %v525 = vadd.f32 %v426, %v524
      %v526 = vpop.f32.mrf.mxu0
      %v527 = vadd.f32 %v431, %v526
      %528 = vmatmul.bf16.gmra.mxu0 %v474
      %v529 = vpop.f32.mrf.mxu0
      %v530 = vadd.f32 %v436, %v529
      %v531 = vpop.f32.mrf.mxu0
      %v532 = vadd.f32 %v441, %v531
      %533 = vdwg.mxu0
      %v534 = vmul.f32 %v486, 0.5
      %v535 = vmul.f32 %v515, 0.5
      %v536 = vmul.f32 %v488, 0.5
      %v537 = vmul.f32 %v517, 0.5
      %v538 = vmul.f32 %v491, 0.5
      %v539 = vmul.f32 %v520, 0.5
      %v540 = vmul.f32 %v493, 0.5
      %v541 = vmul.f32 %v522, 0.5
      %v542 = vmul.f32 %v496, 0.5
      %v543 = vmul.f32 %v525, 0.5
      %v544 = vmul.f32 %v498, 0.5
      %v545 = vmul.f32 %v527, 0.5
      %v546 = vmul.f32 %v501, 0.5
      %v547 = vmul.f32 %v530, 0.5
      %v548 = vmul.f32 %v503, 0.5
      %v549 = vmul.f32 %v532, 0.5
      %v550 = vmul.f32 %v486, 0.044715
      %v551 = vmul.f32 %v515, 0.044715
      %v552 = vmul.f32 %v488, 0.044715
      %v553 = vmul.f32 %v517, 0.044715
      %v554 = vmul.f32 %v491, 0.044715
      %v555 = vmul.f32 %v520, 0.044715
      %v556 = vmul.f32 %v493, 0.044715
      %v557 = vmul.f32 %v522, 0.044715
      %v558 = vmul.f32 %v496, 0.044715
      %v559 = vmul.f32 %v525, 0.044715
      %v560 = vmul.f32 %v498, 0.044715
      %v561 = vmul.f32 %v527, 0.044715
      %v562 = vmul.f32 %v501, 0.044715
      %v563 = vmul.f32 %v530, 0.044715
      %v564 = vmul.f32 %v503, 0.044715
      %v565 = vmul.f32 %v532, 0.044715
      %v566 = vmul.f32 %v550, %v486
      %v567 = vmul.f32 %v551, %v515
      %v568 = vmul.f32 %v552, %v488
      %v569 = vmul.f32 %v553, %v517
      %v570 = vmul.f32 %v554, %v491
      %v571 = vmul.f32 %v555, %v520
      %v572 = vmul.f32 %v556, %v493
      %v573 = vmul.f32 %v557, %v522
      %v574 = vmul.f32 %v558, %v496
      %v575 = vmul.f32 %v559, %v525
      %v576 = vmul.f32 %v560, %v498
      %v577 = vmul.f32 %v561, %v527
      %v578 = vmul.f32 %v562, %v501
      %v579 = vmul.f32 %v563, %v530
      %v580 = vmul.f32 %v564, %v503
      %v581 = vmul.f32 %v565, %v532
      %v582 = vmul.f32 %v566, %v486
      %v583 = vmul.f32 %v567, %v515
      %v584 = vmul.f32 %v568, %v488
      %v585 = vmul.f32 %v569, %v517
      %v586 = vmul.f32 %v570, %v491
      %v587 = vmul.f32 %v571, %v520
      %v588 = vmul.f32 %v572, %v493
      %v589 = vmul.f32 %v573, %v522
      %v590 = vmul.f32 %v574, %v496
      %v591 = vmul.f32 %v575, %v525
      %v592 = vmul.f32 %v576, %v498
      %v593 = vmul.f32 %v577, %v527
      %v594 = vmul.f32 %v578, %v501
      %v595 = vmul.f32 %v579, %v530
      %v596 = vmul.f32 %v580, %v503
      %v597 = vmul.f32 %v581, %v532
      %v598 = vadd.f32 %v486, %v582
      %v599 = vadd.f32 %v515, %v583
      %v600 = vadd.f32 %v488, %v584
      %v601 = vadd.f32 %v517, %v585
      %v602 = vadd.f32 %v491, %v586
      %v603 = vadd.f32 %v520, %v587
      %v604 = vadd.f32 %v493, %v588
      %v605 = vadd.f32 %v522, %v589
      %v606 = vadd.f32 %v496, %v590
      %v607 = vadd.f32 %v525, %v591
      %v608 = vadd.f32 %v498, %v592
      %v609 = vadd.f32 %v527, %v593
      %v610 = vadd.f32 %v501, %v594
      %v611 = vadd.f32 %v530, %v595
      %v612 = vadd.f32 %v503, %v596
      %v613 = vadd.f32 %v532, %v597
      %v614 = vmul.f32 %v598, 0.7978846
      %v615 = vmul.f32 %v599, 0.7978846
      %v616 = vmul.f32 %v600, 0.7978846
      %v617 = vmul.f32 %v601, 0.7978846
      %v618 = vmul.f32 %v602, 0.7978846
      %v619 = vmul.f32 %v603, 0.7978846
      %v620 = vmul.f32 %v604, 0.7978846
      %v621 = vmul.f32 %v605, 0.7978846
      %v622 = vmul.f32 %v606, 0.7978846
      %v623 = vmul.f32 %v607, 0.7978846
      %v624 = vmul.f32 %v608, 0.7978846
      %v625 = vmul.f32 %v609, 0.7978846
      %v626 = vmul.f32 %v610, 0.7978846
      %v627 = vmul.f32 %v611, 0.7978846
      %v628 = vmul.f32 %v612, 0.7978846
      %v629 = vmul.f32 %v613, 0.7978846
      %v630 = vtanh.pop %v614
      %v631 = vtanh.pop %v615
      %v632 = vtanh.pop %v616
      %v633 = vtanh.pop %v617
      %v634 = vtanh.pop %v618
      %v635 = vtanh.pop %v619
      %v636 = vtanh.pop %v620
      %v637 = vtanh.pop %v621
      %v638 = vtanh.pop %v622
      %v639 = vtanh.pop %v623
      %v640 = vtanh.pop %v624
      %v641 = vtanh.pop %v625
      %v642 = vtanh.pop %v626
      %v643 = vtanh.pop %v627
      %v644 = vtanh.pop %v628
      %v645 = vtanh.pop %v629
      %v646 = vadd.f32 %v630, 1.0
      %v647 = vadd.f32 %v631, 1.0
      %v648 = vadd.f32 %v632, 1.0
      %v649 = vadd.f32 %v633, 1.0
      %v650 = vadd.f32 %v634, 1.0
      %v651 = vadd.f32 %v635, 1.0
      %v652 = vadd.f32 %v636, 1.0
      %v653 = vadd.f32 %v637, 1.0
      %v654 = vadd.f32 %v638, 1.0
      %v655 = vadd.f32 %v639, 1.0
      %v656 = vadd.f32 %v640, 1.0
      %v657 = vadd.f32 %v641, 1.0
      %v658 = vadd.f32 %v642, 1.0
      %v659 = vadd.f32 %v643, 1.0
      %v660 = vadd.f32 %v644, 1.0
      %v661 = vadd.f32 %v645, 1.0
      %v662 = vmul.f32 %v534, %v646
      %v663 = vmul.f32 %v535, %v647
      %v664 = vmul.f32 %v536, %v648
      %v665 = vmul.f32 %v537, %v649
      %v666 = vmul.f32 %v538, %v650
      %v667 = vmul.f32 %v539, %v651
      %v668 = vmul.f32 %v540, %v652
      %v669 = vmul.f32 %v541, %v653
      %v670 = vmul.f32 %v542, %v654
      %v671 = vmul.f32 %v543, %v655
      %v672 = vmul.f32 %v544, %v656
      %v673 = vmul.f32 %v545, %v657
      %v674 = vmul.f32 %v546, %v658
      %v675 = vmul.f32 %v547, %v659
      %v676 = vmul.f32 %v548, %v660
      %v677 = vmul.f32 %v549, %v661
      %v678 = vadd.f32 %v662, %v663
      %679 = vadd.xlane.f32.xlu0 %v678
      %v680 = vpop.xlane.xlu0 %679
      %v681 = vadd.f32 %v664, %v665
      %682 = vadd.xlane.f32.xlu0 %v681
      %v683 = vpop.xlane.xlu0 %682
      %v684 = vadd.f32 %v666, %v667
      %685 = vadd.xlane.f32.xlu0 %v684
      %v686 = vpop.xlane.xlu0 %685
      %v687 = vadd.f32 %v668, %v669
      %688 = vadd.xlane.f32.xlu0 %v687
      %v689 = vpop.xlane.xlu0 %688
      %v690 = vadd.f32 %v670, %v671
      %691 = vadd.xlane.f32.xlu0 %v690
      %v692 = vpop.xlane.xlu0 %691
      %v693 = vadd.f32 %v672, %v673
      %694 = vadd.xlane.f32.xlu0 %v693
      %v695 = vpop.xlane.xlu0 %694
      %v696 = vadd.f32 %v674, %v675
      %697 = vadd.xlane.f32.xlu0 %v696
      %v698 = vpop.xlane.xlu0 %697
      %v699 = vadd.f32 %v676, %v677
      %700 = vadd.xlane.f32.xlu0 %v699
      %v701 = vpop.xlane.xlu0 %700
      %v702 = vrcp.pop 256.0
      %v703 = vmul.f32 256.0, %v702
      %v704 = vsub.f32 1.0, %v703
      %v705 = vmul.f32 %v702, %v704
      %v706 = vadd.f32 %v702, %v705
      %vm707 = vweird.f32 %v702
      %v708 = vsel %vm707, %v702, %v706
      %v709 = vmul.f32 %v680, %v708
      %v710 = vmul.f32 %v683, %v708
      %v711 = vmul.f32 %v686, %v708
      %v712 = vmul.f32 %v689, %v708
      %v713 = vmul.f32 %v692, %v708
      %v714 = vmul.f32 %v695, %v708
      %v715 = vmul.f32 %v698, %v708
      %v716 = vmul.f32 %v701, %v708
      %v717 = vmul.f32 %v366, %v709
      %v718 = vmul.f32 %v367, %v710
      %v719 = vmul.f32 %v368, %v711
      %v720 = vmul.f32 %v369, %v712
      %v721 = vmul.f32 %v370, %v713
      %v722 = vmul.f32 %v371, %v714
      %v723 = vmul.f32 %v372, %v715
      %v724 = vmul.f32 %v373, %v716
      %vm725 = vcmask 31744
      %v726 = vsel %vm725, %v717, 0.0
      %v727 = vsel %vm725, %v718, 0.0
      %v728 = vadd.f32 %v726, %v727
      %v729 = vsel %vm725, %v719, 0.0
      %v730 = vadd.f32 %v728, %v729
      %v731 = vsel %vm725, %v720, 0.0
      %v732 = vadd.f32 %v730, %v731
      %v733 = vsel %vm725, %v721, 0.0
      %v734 = vadd.f32 %v732, %v733
      %v735 = vsel %vm725, %v722, 0.0
      %v736 = vadd.f32 %v734, %v735
      %v737 = vsel %vm725, %v723, 0.0
      %v738 = vadd.f32 %v736, %v737
      %v739 = vsel %vm725, %v724, 0.0
      %v740 = vadd.f32 %v738, %v739
      %v741 = vrot.slane %v740, 4
      %v742 = vadd.f32 %v740, %v741
      %v743 = vrot.slane %v742, 2
      %v744 = vadd.f32 %v742, %v743
      %v745 = vrot.slane %v744, 1
      %v746 = vadd.f32 %v744, %v745
      %v747 = vadd.f32 %v746, %v374
      %v748 = vmax.f32 %v747, 0.0
      %v749 = vperm.slane %v748, 0
      %v750 = vmul.f32 %v375, %v749
      %v751 = vmul.f32 %v376, %v749
      %v752 = vmul.f32 %v377, %v749
      %v753 = vmul.f32 %v378, %v749
      %v754 = vmul.f32 %v379, %v749
      %v755 = vmul.f32 %v380, %v749
      %v756 = vmul.f32 %v381, %v749
      %v757 = vmul.f32 %v382, %v749
      %v758 = vsel %vm725, %v750, 0.0
      %759 = vadd.xlane.f32.xlu0 %v758
      %v760 = vpop.xlane.xlu0 %759
      %v761 = vsel %vm725, %v751, 0.0
      %762 = vadd.xlane.f32.xlu0 %v761
      %v763 = vpop.xlane.xlu0 %762
      %v764 = vsel %vm725, %v752, 0.0
      %765 = vadd.xlane.f32.xlu0 %v764
      %v766 = vpop.xlane.xlu0 %765
      %v767 = vsel %vm725, %v753, 0.0
      %768 = vadd.xlane.f32.xlu0 %v767
      %v769 = vpop.xlane.xlu0 %768
      %v770 = vsel %vm725, %v754, 0.0
      %771 = vadd.xlane.f32.xlu0 %v770
      %v772 = vpop.xlane.xlu0 %771
      %v773 = vsel %vm725, %v755, 0.0
      %774 = vadd.xlane.f32.xlu0 %v773
      %v775 = vpop.xlane.xlu0 %774
      %v776 = vsel %vm725, %v756, 0.0
      %777 = vadd.xlane.f32.xlu0 %v776
      %v778 = vpop.xlane.xlu0 %777
      %v779 = vsel %vm725, %v757, 0.0
      %780 = vadd.xlane.f32.xlu0 %v779
      %v781 = vpop.xlane.xlu0 %780
      %v782 = vadd.f32 %v760, %v383
      %v783 = vadd.f32 %v763, %v384
      %v784 = vadd.f32 %v766, %v385
      %v785 = vadd.f32 %v769, %v386
      %v786 = vadd.f32 %v772, %v387
      %v787 = vadd.f32 %v775, %v388
      %v788 = vadd.f32 %v778, %v389
      %v789 = vadd.f32 %v781, %v390
      %v790 = vxor.u32 %v782, 2147483648
      %v791 = vxor.u32 %v783, 2147483648
      %v792 = vxor.u32 %v784, 2147483648
      %v793 = vxor.u32 %v785, 2147483648
      %v794 = vxor.u32 %v786, 2147483648
      %v795 = vxor.u32 %v787, 2147483648
      %v796 = vxor.u32 %v788, 2147483648
      %v797 = vxor.u32 %v789, 2147483648
      %v798 = vmul.f32 %v790, 1.442695
      %v799 = vpow.pop %v798
      %v800 = vmul.f32 %v791, 1.442695
      %v801 = vpow.pop %v800
      %v802 = vmul.f32 %v792, 1.442695
      %v803 = vpow.pop %v802
      %v804 = vmul.f32 %v793, 1.442695
      %v805 = vpow.pop %v804
      %v806 = vmul.f32 %v794, 1.442695
      %v807 = vpow.pop %v806
      %v808 = vmul.f32 %v795, 1.442695
      %v809 = vpow.pop %v808
      %v810 = vmul.f32 %v796, 1.442695
      %v811 = vpow.pop %v810
      %v812 = vmul.f32 %v797, 1.442695
      %v813 = vpow.pop %v812
      %v814 = vadd.f32 %v799, 1.0
      %v815 = vadd.f32 %v801, 1.0
      %v816 = vadd.f32 %v803, 1.0
      %v817 = vadd.f32 %v805, 1.0
      %v818 = vadd.f32 %v807, 1.0
      %v819 = vadd.f32 %v809, 1.0
      %v820 = vadd.f32 %v811, 1.0
      %v821 = vadd.f32 %v813, 1.0
      %v822 = vrcp.pop %v814
      %v823 = vmul.f32 %v814, %v822
      %v824 = vsub.f32 1.0, %v823
      %v825 = vmul.f32 %v822, %v824
      %v826 = vadd.f32 %v822, %v825
      %vm827 = vweird.f32 %v814
      %vm828 = vweird.f32 %v822
      %vm829 = vmor %vm827, %vm828
      %v830 = vsel %vm829, %v822, %v826
      %v831 = vand.u32 2147483647, %v814
      %vm832 = vcmp.eq.f32.partialorder %v831, 8.507059e+37
      %v833 = vand.u32 %v814, 2147483648
      %v834 = vor.u32 1.1754944e-38, %v833
      %v835 = vsel %vm832, %v834, %v830
      %v836 = vmul.f32 1.0, %v835
      %v837 = vrcp.pop %v815
      %v838 = vmul.f32 %v815, %v837
      %v839 = vsub.f32 1.0, %v838
      %v840 = vmul.f32 %v837, %v839
      %v841 = vadd.f32 %v837, %v840
      %vm842 = vweird.f32 %v815
      %vm843 = vweird.f32 %v837
      %vm844 = vmor %vm842, %vm843
      %v845 = vsel %vm844, %v837, %v841
      %v846 = vand.u32 2147483647, %v815
      %vm847 = vcmp.eq.f32.partialorder %v846, 8.507059e+37
      %v848 = vand.u32 %v815, 2147483648
      %v849 = vor.u32 1.1754944e-38, %v848
      %v850 = vsel %vm847, %v849, %v845
      %v851 = vmul.f32 1.0, %v850
      %v852 = vrcp.pop %v816
      %v853 = vmul.f32 %v816, %v852
      %v854 = vsub.f32 1.0, %v853
      %v855 = vmul.f32 %v852, %v854
      %v856 = vadd.f32 %v852, %v855
      %vm857 = vweird.f32 %v816
      %vm858 = vweird.f32 %v852
      %vm859 = vmor %vm857, %vm858
      %v860 = vsel %vm859, %v852, %v856
      %v861 = vand.u32 2147483647, %v816
      %vm862 = vcmp.eq.f32.partialorder %v861, 8.507059e+37
      %v863 = vand.u32 %v816, 2147483648
      %v864 = vor.u32 1.1754944e-38, %v863
      %v865 = vsel %vm862, %v864, %v860
      %v866 = vmul.f32 1.0, %v865
      %v867 = vrcp.pop %v817
      %v868 = vmul.f32 %v817, %v867
      %v869 = vsub.f32 1.0, %v868
      %v870 = vmul.f32 %v867, %v869
      %v871 = vadd.f32 %v867, %v870
      %vm872 = vweird.f32 %v817
      %vm873 = vweird.f32 %v867
      %vm874 = vmor %vm872, %vm873
      %v875 = vsel %vm874, %v867, %v871
      %v876 = vand.u32 2147483647, %v817
      %vm877 = vcmp.eq.f32.partialorder %v876, 8.507059e+37
      %v878 = vand.u32 %v817, 2147483648
      %v879 = vor.u32 1.1754944e-38, %v878
      %v880 = vsel %vm877, %v879, %v875
      %v881 = vmul.f32 1.0, %v880
      %v882 = vrcp.pop %v818
      %v883 = vmul.f32 %v818, %v882
      %v884 = vsub.f32 1.0, %v883
      %v885 = vmul.f32 %v882, %v884
      %v886 = vadd.f32 %v882, %v885
      %vm887 = vweird.f32 %v818
      %vm888 = vweird.f32 %v882
      %vm889 = vmor %vm887, %vm888
      %v890 = vsel %vm889, %v882, %v886
      %v891 = vand.u32 2147483647, %v818
      %vm892 = vcmp.eq.f32.partialorder %v891, 8.507059e+37
      %v893 = vand.u32 %v818, 2147483648
      %v894 = vor.u32 1.1754944e-38, %v893
      %v895 = vsel %vm892, %v894, %v890
      %v896 = vmul.f32 1.0, %v895
      %v897 = vrcp.pop %v819
      %v898 = vmul.f32 %v819, %v897
      %v899 = vsub.f32 1.0, %v898
      %v900 = vmul.f32 %v897, %v899
      %v901 = vadd.f32 %v897, %v900
      %vm902 = vweird.f32 %v819
      %vm903 = vweird.f32 %v897
      %vm904 = vmor %vm902, %vm903
      %v905 = vsel %vm904, %v897, %v901
      %v906 = vand.u32 2147483647, %v819
      %vm907 = vcmp.eq.f32.partialorder %v906, 8.507059e+37
      %v908 = vand.u32 %v819, 2147483648
      %v909 = vor.u32 1.1754944e-38, %v908
      %v910 = vsel %vm907, %v909, %v905
      %v911 = vmul.f32 1.0, %v910
      %v912 = vrcp.pop %v820
      %v913 = vmul.f32 %v820, %v912
      %v914 = vsub.f32 1.0, %v913
      %v915 = vmul.f32 %v912, %v914
      %v916 = vadd.f32 %v912, %v915
      %vm917 = vweird.f32 %v820
      %vm918 = vweird.f32 %v912
      %vm919 = vmor %vm917, %vm918
      %v920 = vsel %vm919, %v912, %v916
      %v921 = vand.u32 2147483647, %v820
      %vm922 = vcmp.eq.f32.partialorder %v921, 8.507059e+37
      %v923 = vand.u32 %v820, 2147483648
      %v924 = vor.u32 1.1754944e-38, %v923
      %v925 = vsel %vm922, %v924, %v920
      %v926 = vmul.f32 1.0, %v925
      %v927 = vrcp.pop %v821
      %v928 = vmul.f32 %v821, %v927
      %v929 = vsub.f32 1.0, %v928
      %v930 = vmul.f32 %v927, %v929
      %v931 = vadd.f32 %v927, %v930
      %vm932 = vweird.f32 %v821
      %vm933 = vweird.f32 %v927
      %vm934 = vmor %vm932, %vm933
      %v935 = vsel %vm934, %v927, %v931
      %v936 = vand.u32 2147483647, %v821
      %vm937 = vcmp.eq.f32.partialorder %v936, 8.507059e+37
      %v938 = vand.u32 %v821, 2147483648
      %v939 = vor.u32 1.1754944e-38, %v938
      %v940 = vsel %vm937, %v939, %v935
      %v941 = vmul.f32 1.0, %v940
      %943 = vset.pattern.permute.xlu0 0
      %944 = vperm.xlu0 %943, %v836
      %v945 = vpop.permute.xlu0 %944
      %948 = vset.pattern.permute.xlu0 0
      %949 = vperm.xlu0 %948, %v851
      %v950 = vpop.permute.xlu0 %949
      %953 = vset.pattern.permute.xlu0 0
      %954 = vperm.xlu0 %953, %v866
      %v955 = vpop.permute.xlu0 %954
      %958 = vset.pattern.permute.xlu0 0
      %959 = vperm.xlu0 %958, %v881
      %v960 = vpop.permute.xlu0 %959
      %963 = vset.pattern.permute.xlu0 0
      %964 = vperm.xlu0 %963, %v896
      %v965 = vpop.permute.xlu0 %964
      %968 = vset.pattern.permute.xlu0 0
      %969 = vperm.xlu0 %968, %v911
      %v970 = vpop.permute.xlu0 %969
      %973 = vset.pattern.permute.xlu0 0
      %974 = vperm.xlu0 %973, %v926
      %v975 = vpop.permute.xlu0 %974
      %978 = vset.pattern.permute.xlu0 0
      %979 = vperm.xlu0 %978, %v941
      %v980 = vpop.permute.xlu0 %979
      %v982 = vmul.f32 %v662, %v945
      %v983 = vmul.f32 %v663, %v945
      %v984 = vmul.f32 %v664, %v950
      %v985 = vmul.f32 %v665, %v950
      %v986 = vmul.f32 %v666, %v955
      %v987 = vmul.f32 %v667, %v955
      %v988 = vmul.f32 %v668, %v960
      %v989 = vmul.f32 %v669, %v960
      %v990 = vmul.f32 %v670, %v965
      %v991 = vmul.f32 %v671, %v965
      %v992 = vmul.f32 %v672, %v970
      %v993 = vmul.f32 %v673, %v970
      %v994 = vmul.f32 %v674, %v975
      %v995 = vmul.f32 %v675, %v975
      %v996 = vmul.f32 %v676, %v980
      %v997 = vmul.f32 %v677, %v980
      %v998 = vpack.c.bf16 %v984, %v982
      %v999 = vpack.c.bf16 %v985, %v983
      %v1000 = vpack.c.bf16 %v988, %v986
      %v1001 = vpack.c.bf16 %v989, %v987
      %v1002 = vpack.c.bf16 %v992, %v990
      %v1003 = vpack.c.bf16 %v993, %v991
      %v1004 = vpack.c.bf16 %v996, %v994
      %v1005 = vpack.c.bf16 %v997, %v995
      %1007 = vset.pattern.permute.xlu0 0
      %1008 = vperm.xlu0 %1007, %v362
      %v1009 = vpop.permute.xlu0 %1008
      %1012 = vset.pattern.permute.xlu0 0
      %1013 = vperm.xlu0 %1012, %v363
      %v1014 = vpop.permute.xlu0 %1013
      %1017 = vset.pattern.permute.xlu0 0
      %1018 = vperm.xlu0 %1017, %v364
      %v1019 = vpop.permute.xlu0 %1018
      %1022 = vset.pattern.permute.xlu0 0
      %1023 = vperm.xlu0 %1022, %v365
      %v1024 = vpop.permute.xlu0 %1023
      %v1030 = vunpack.c.l.b16 %v350
      %v1031 = vunpack.c.l.b16 %v351
      %v1032 = vunpack.c.l.b16 %v352
      %v1033 = vunpack.c.l.b16 %v353
      %v1034 = vpack.c.b16 %v1031, %v1030
      %v1035 = vpack.c.b16 %v1033, %v1032
      %vm1036 = vcmask 523264
      %v1038 = vsel %vm1036, %v1034, 0
      %v1041 = vsel %vm1036, %v1035, 0
      %1043 = vmatpush.bf16.msra.mxu0 0
      %1044 = vmatpush.bf16.msra.mxu0 0
      %1045 = vmatpush.bf16.msra.mxu0 0
      %1046 = vmatpush.bf16.msra.mxu0 0
      %1047 = vmatpush.bf16.msra.mxu0 %v1004
      %1048 = vmatpush.bf16.msra.mxu0 %v1002
      %1049 = vmatpush.bf16.msra.mxu0 %v1000
      %1050 = vmatpush.bf16.msra.mxu0 %v998
      %1051 = vmatmul.bf16.gmra.mxu0 %v1038
      %v1052 = vpop.f32.mrf.mxu0
      %v1053 = vadd.f32 %v1009, %v1052
      %v1054 = vpop.f32.mrf.mxu0
      %v1055 = vadd.f32 %v1014, %v1054
      %1056 = vmatmul.bf16.gmra.mxu0 %v1041
      %v1057 = vpop.f32.mrf.mxu0
      %v1058 = vadd.f32 %v1019, %v1057
      %v1059 = vpop.f32.mrf.mxu0
      %v1060 = vadd.f32 %v1024, %v1059
      %1061 = vdwg.mxu0
      %1062 = vmatpush.bf16.msra.mxu0 0
      %1063 = vmatpush.bf16.msra.mxu0 0
      %1064 = vmatpush.bf16.msra.mxu0 0
      %1065 = vmatpush.bf16.msra.mxu0 0
      %1066 = vmatpush.bf16.msra.mxu0 %v1005
      %1067 = vmatpush.bf16.msra.mxu0 %v1003
      %1068 = vmatpush.bf16.msra.mxu0 %v1001
      %1069 = vmatpush.bf16.msra.mxu0 %v999
      %1070 = vmatmul.bf16.gmra.mxu0 %v1038
      %v1071 = vpop.f32.mrf.mxu0
      %v1072 = vadd.f32 %v1009, %v1071
      %v1073 = vpop.f32.mrf.mxu0
      %v1074 = vadd.f32 %v1014, %v1073
      %1075 = vmatmul.bf16.gmra.mxu0 %v1041
      %v1076 = vpop.f32.mrf.mxu0
      %v1077 = vadd.f32 %v1019, %v1076
      %v1078 = vpop.f32.mrf.mxu0
      %v1079 = vadd.f32 %v1024, %v1078
      %1080 = vdwg.mxu0
      %v1081 = vmul.f32 %v1053, 0.5
      %v1082 = vmul.f32 %v1072, 0.5
      %v1083 = vmul.f32 %v1055, 0.5
      %v1084 = vmul.f32 %v1074, 0.5
      %v1085 = vmul.f32 %v1058, 0.5
      %v1086 = vmul.f32 %v1077, 0.5
      %v1087 = vmul.f32 %v1060, 0.5
      %v1088 = vmul.f32 %v1079, 0.5
      %v1089 = vmul.f32 %v1053, 0.044715
      %v1090 = vmul.f32 %v1072, 0.044715
      %v1091 = vmul.f32 %v1055, 0.044715
      %v1092 = vmul.f32 %v1074, 0.044715
      %v1093 = vmul.f32 %v1058, 0.044715
      %v1094 = vmul.f32 %v1077, 0.044715
      %v1095 = vmul.f32 %v1060, 0.044715
      %v1096 = vmul.f32 %v1079, 0.044715
      %v1097 = vmul.f32 %v1089, %v1053
      %v1098 = vmul.f32 %v1090, %v1072
      %v1099 = vmul.f32 %v1091, %v1055
      %v1100 = vmul.f32 %v1092, %v1074
      %v1101 = vmul.f32 %v1093, %v1058
      %v1102 = vmul.f32 %v1094, %v1077
      %v1103 = vmul.f32 %v1095, %v1060
      %v1104 = vmul.f32 %v1096, %v1079
      %v1105 = vmul.f32 %v1097, %v1053
      %v1106 = vmul.f32 %v1098, %v1072
      %v1107 = vmul.f32 %v1099, %v1055
      %v1108 = vmul.f32 %v1100, %v1074
      %v1109 = vmul.f32 %v1101, %v1058
      %v1110 = vmul.f32 %v1102, %v1077
      %v1111 = vmul.f32 %v1103, %v1060
      %v1112 = vmul.f32 %v1104, %v1079
      %v1113 = vadd.f32 %v1053, %v1105
      %v1114 = vadd.f32 %v1072, %v1106
      %v1115 = vadd.f32 %v1055, %v1107
      %v1116 = vadd.f32 %v1074, %v1108
      %v1117 = vadd.f32 %v1058, %v1109
      %v1118 = vadd.f32 %v1077, %v1110
      %v1119 = vadd.f32 %v1060, %v1111
      %v1120 = vadd.f32 %v1079, %v1112
      %v1121 = vmul.f32 %v1113, 0.7978846
      %v1122 = vmul.f32 %v1114, 0.7978846
      %v1123 = vmul.f32 %v1115, 0.7978846
      %v1124 = vmul.f32 %v1116, 0.7978846
      %v1125 = vmul.f32 %v1117, 0.7978846
      %v1126 = vmul.f32 %v1118, 0.7978846
      %v1127 = vmul.f32 %v1119, 0.7978846
      %v1128 = vmul.f32 %v1120, 0.7978846
      %v1129 = vtanh.pop %v1121
      %v1130 = vtanh.pop %v1122
      %v1131 = vtanh.pop %v1123
      %v1132 = vtanh.pop %v1124
      %v1133 = vtanh.pop %v1125
      %v1134 = vtanh.pop %v1126
      %v1135 = vtanh.pop %v1127
      %v1136 = vtanh.pop %v1128
      %v1137 = vadd.f32 %v1129, 1.0
      %v1138 = vadd.f32 %v1130, 1.0
      %v1139 = vadd.f32 %v1131, 1.0
      %v1140 = vadd.f32 %v1132, 1.0
      %v1141 = vadd.f32 %v1133, 1.0
      %v1142 = vadd.f32 %v1134, 1.0
      %v1143 = vadd.f32 %v1135, 1.0
      %v1144 = vadd.f32 %v1136, 1.0
      %v1145 = vmul.f32 %v1081, %v1137
      %v1146 = vmul.f32 %v1082, %v1138
      %v1147 = vmul.f32 %v1083, %v1139
      %v1148 = vmul.f32 %v1084, %v1140
      %v1149 = vmul.f32 %v1085, %v1141
      %v1150 = vmul.f32 %v1086, %v1142
      %v1151 = vmul.f32 %v1087, %v1143
      %v1152 = vmul.f32 %v1088, %v1144
      %v1153 = vadd.f32 %v1145, %v391
      %v1154 = vadd.f32 %v1146, %v392
      %v1155 = vadd.f32 %v1147, %v393
      %v1156 = vadd.f32 %v1148, %v394
      %v1157 = vadd.f32 %v1149, %v395
      %v1158 = vadd.f32 %v1150, %v396
      %v1159 = vadd.f32 %v1151, %v397
      %v1160 = vadd.f32 %v1152, %v398
      %1161 = vst [vmem:[%s339] sm:$0xff] %v1153
      %1162 = vst [vmem:[%s339 + $0x8] sm:$0xff] %v1154
      %1163 = vst [vmem:[%s339 + $0x10] sm:$0xff] %v1155
      %1164 = vst [vmem:[%s339 + $0x18] sm:$0xff] %v1156
      %1165 = vst [vmem:[%s339 + $0x20] sm:$0xff] %v1157
      %1166 = vst [vmem:[%s339 + $0x28] sm:$0xff] %v1158
      %1167 = vst [vmem:[%s339 + $0x30] sm:$0xff] %v1159
      %1168 = vst [vmem:[%s339 + $0x38] sm:$0xff] %v1160
      %s1169 = scalar_lea.vmem %s332, 64
      %v1170 = vld [vmem:[%s1169] sm:$0xff]
      %v1171 = vld [vmem:[%s1169 + $0x8] sm:$0xff]
      %v1172 = vld [vmem:[%s1169 + $0x10] sm:$0xff]
      %v1173 = vld [vmem:[%s1169 + $0x18] sm:$0xff]
      %v1174 = vld [vmem:[%s1169 + $0x20] sm:$0xff]
      %v1175 = vld [vmem:[%s1169 + $0x28] sm:$0xff]
      %v1176 = vld [vmem:[%s1169 + $0x30] sm:$0xff]
      %v1177 = vld [vmem:[%s1169 + $0x38] sm:$0xff]
      %v1178 = vpack.c.bf16 %v1172, %v1170
      %v1179 = vpack.c.bf16 %v1173, %v1171
      %v1180 = vpack.c.bf16 %v1176, %v1174
      %v1181 = vpack.c.bf16 %v1177, %v1175
      %1182 = vmatpush.bf16.msra.mxu0 0
      %1183 = vmatpush.bf16.msra.mxu0 0
      %1184 = vmatpush.bf16.msra.mxu0 0
      %1185 = vmatpush.bf16.msra.mxu0 0
      %1186 = vmatpush.bf16.msra.mxu0 0
      %1187 = vmatpush.bf16.msra.mxu0 0
      %1188 = vmatpush.bf16.msra.mxu0 %v1180
      %1189 = vmatpush.bf16.msra.mxu0 %v1178
      %1190 = vmatmul.bf16.gmra.mxu0 %v465
      %v1191 = vpop.f32.mrf.mxu0
      %v1192 = vadd.f32 %v406, %v1191
      %v1193 = vpop.f32.mrf.mxu0
      %v1194 = vadd.f32 %v411, %v1193
      %1195 = vmatmul.bf16.gmra.mxu0 %v468
      %v1196 = vpop.f32.mrf.mxu0
      %v1197 = vadd.f32 %v416, %v1196
      %v1198 = vpop.f32.mrf.mxu0
      %v1199 = vadd.f32 %v421, %v1198
      %1200 = vmatmul.bf16.gmra.mxu0 %v471
      %v1201 = vpop.f32.mrf.mxu0
      %v1202 = vadd.f32 %v426, %v1201
      %v1203 = vpop.f32.mrf.mxu0
      %v1204 = vadd.f32 %v431, %v1203
      %1205 = vmatmul.bf16.gmra.mxu0 %v474
      %v1206 = vpop.f32.mrf.mxu0
      %v1207 = vadd.f32 %v436, %v1206
      %v1208 = vpop.f32.mrf.mxu0
      %v1209 = vadd.f32 %v441, %v1208
      %1210 = vdwg.mxu0
      %1211 = vmatpush.bf16.msra.mxu0 0
      %1212 = vmatpush.bf16.msra.mxu0 0
      %1213 = vmatpush.bf16.msra.mxu0 0
      %1214 = vmatpush.bf16.msra.mxu0 0
      %1215 = vmatpush.bf16.msra.mxu0 0
      %1216 = vmatpush.bf16.msra.mxu0 0
      %1217 = vmatpush.bf16.msra.mxu0 %v1181
      %1218 = vmatpush.bf16.msra.mxu0 %v1179
      %1219 = vmatmul.bf16.gmra.mxu0 %v465
      %v1220 = vpop.f32.mrf.mxu0
      %v1221 = vadd.f32 %v406, %v1220
      %v1222 = vpop.f32.mrf.mxu0
      %v1223 = vadd.f32 %v411, %v1222
      %1224 = vmatmul.bf16.gmra.mxu0 %v468
      %v1225 = vpop.f32.mrf.mxu0
      %v1226 = vadd.f32 %v416, %v1225
      %v1227 = vpop.f32.mrf.mxu0
      %v1228 = vadd.f32 %v421, %v1227
      %1229 = vmatmul.bf16.gmra.mxu0 %v471
      %v1230 = vpop.f32.mrf.mxu0
      %v1231 = vadd.f32 %v426, %v1230
      %v1232 = vpop.f32.mrf.mxu0
      %v1233 = vadd.f32 %v431, %v1232
      %1234 = vmatmul.bf16.gmra.mxu0 %v474
      %v1235 = vpop.f32.mrf.mxu0
      %v1236 = vadd.f32 %v436, %v1235
      %v1237 = vpop.f32.mrf.mxu0
      %v1238 = vadd.f32 %v441, %v1237
      %1239 = vdwg.mxu0
      %v1240 = vmul.f32 %v1192, 0.5
      %v1241 = vmul.f32 %v1221, 0.5
      %v1242 = vmul.f32 %v1194, 0.5
      %v1243 = vmul.f32 %v1223, 0.5
      %v1244 = vmul.f32 %v1197, 0.5
      %v1245 = vmul.f32 %v1226, 0.5
      %v1246 = vmul.f32 %v1199, 0.5
      %v1247 = vmul.f32 %v1228, 0.5
      %v1248 = vmul.f32 %v1202, 0.5
      %v1249 = vmul.f32 %v1231, 0.5
      %v1250 = vmul.f32 %v1204, 0.5
      %v1251 = vmul.f32 %v1233, 0.5
      %v1252 = vmul.f32 %v1207, 0.5
      %v1253 = vmul.f32 %v1236, 0.5
      %v1254 = vmul.f32 %v1209, 0.5
      %v1255 = vmul.f32 %v1238, 0.5
      %v1256 = vmul.f32 %v1192, 0.044715
      %v1257 = vmul.f32 %v1221, 0.044715
      %v1258 = vmul.f32 %v1194, 0.044715
      %v1259 = vmul.f32 %v1223, 0.044715
      %v1260 = vmul.f32 %v1197, 0.044715
      %v1261 = vmul.f32 %v1226, 0.044715
      %v1262 = vmul.f32 %v1199, 0.044715
      %v1263 = vmul.f32 %v1228, 0.044715
      %v1264 = vmul.f32 %v1202, 0.044715
      %v1265 = vmul.f32 %v1231, 0.044715
      %v1266 = vmul.f32 %v1204, 0.044715
      %v1267 = vmul.f32 %v1233, 0.044715
      %v1268 = vmul.f32 %v1207, 0.044715
      %v1269 = vmul.f32 %v1236, 0.044715
      %v1270 = vmul.f32 %v1209, 0.044715
      %v1271 = vmul.f32 %v1238, 0.044715
      %v1272 = vmul.f32 %v1256, %v1192
      %v1273 = vmul.f32 %v1257, %v1221
      %v1274 = vmul.f32 %v1258, %v1194
      %v1275 = vmul.f32 %v1259, %v1223
      %v1276 = vmul.f32 %v1260, %v1197
      %v1277 = vmul.f32 %v1261, %v1226
      %v1278 = vmul.f32 %v1262, %v1199
      %v1279 = vmul.f32 %v1263, %v1228
      %v1280 = vmul.f32 %v1264, %v1202
      %v1281 = vmul.f32 %v1265, %v1231
      %v1282 = vmul.f32 %v1266, %v1204
      %v1283 = vmul.f32 %v1267, %v1233
      %v1284 = vmul.f32 %v1268, %v1207
      %v1285 = vmul.f32 %v1269, %v1236
      %v1286 = vmul.f32 %v1270, %v1209
      %v1287 = vmul.f32 %v1271, %v1238
      %v1288 = vmul.f32 %v1272, %v1192
      %v1289 = vmul.f32 %v1273, %v1221
      %v1290 = vmul.f32 %v1274, %v1194
      %v1291 = vmul.f32 %v1275, %v1223
      %v1292 = vmul.f32 %v1276, %v1197
      %v1293 = vmul.f32 %v1277, %v1226
      %v1294 = vmul.f32 %v1278, %v1199
      %v1295 = vmul.f32 %v1279, %v1228
      %v1296 = vmul.f32 %v1280, %v1202
      %v1297 = vmul.f32 %v1281, %v1231
      %v1298 = vmul.f32 %v1282, %v1204
      %v1299 = vmul.f32 %v1283, %v1233
      %v1300 = vmul.f32 %v1284, %v1207
      %v1301 = vmul.f32 %v1285, %v1236
      %v1302 = vmul.f32 %v1286, %v1209
      %v1303 = vmul.f32 %v1287, %v1238
      %v1304 = vadd.f32 %v1192, %v1288
      %v1305 = vadd.f32 %v1221, %v1289
      %v1306 = vadd.f32 %v1194, %v1290
      %v1307 = vadd.f32 %v1223, %v1291
      %v1308 = vadd.f32 %v1197, %v1292
      %v1309 = vadd.f32 %v1226, %v1293
      %v1310 = vadd.f32 %v1199, %v1294
      %v1311 = vadd.f32 %v1228, %v1295
      %v1312 = vadd.f32 %v1202, %v1296
      %v1313 = vadd.f32 %v1231, %v1297
      %v1314 = vadd.f32 %v1204, %v1298
      %v1315 = vadd.f32 %v1233, %v1299
      %v1316 = vadd.f32 %v1207, %v1300
      %v1317 = vadd.f32 %v1236, %v1301
      %v1318 = vadd.f32 %v1209, %v1302
      %v1319 = vadd.f32 %v1238, %v1303
      %v1320 = vmul.f32 %v1304, 0.7978846
      %v1321 = vmul.f32 %v1305, 0.7978846
      %v1322 = vmul.f32 %v1306, 0.7978846
      %v1323 = vmul.f32 %v1307, 0.7978846
      %v1324 = vmul.f32 %v1308, 0.7978846
      %v1325 = vmul.f32 %v1309, 0.7978846
      %v1326 = vmul.f32 %v1310, 0.7978846
      %v1327 = vmul.f32 %v1311, 0.7978846
      %v1328 = vmul.f32 %v1312, 0.7978846
      %v1329 = vmul.f32 %v1313, 0.7978846
      %v1330 = vmul.f32 %v1314, 0.7978846
      %v1331 = vmul.f32 %v1315, 0.7978846
      %v1332 = vmul.f32 %v1316, 0.7978846
      %v1333 = vmul.f32 %v1317, 0.7978846
      %v1334 = vmul.f32 %v1318, 0.7978846
      %v1335 = vmul.f32 %v1319, 0.7978846
      %v1336 = vtanh.pop %v1320
      %v1337 = vtanh.pop %v1321
      %v1338 = vtanh.pop %v1322
      %v1339 = vtanh.pop %v1323
      %v1340 = vtanh.pop %v1324
      %v1341 = vtanh.pop %v1325
      %v1342 = vtanh.pop %v1326
      %v1343 = vtanh.pop %v1327
      %v1344 = vtanh.pop %v1328
      %v1345 = vtanh.pop %v1329
      %v1346 = vtanh.pop %v1330
      %v1347 = vtanh.pop %v1331
      %v1348 = vtanh.pop %v1332
      %v1349 = vtanh.pop %v1333
      %v1350 = vtanh.pop %v1334
      %v1351 = vtanh.pop %v1335
      %v1352 = vadd.f32 %v1336, 1.0
      %v1353 = vadd.f32 %v1337, 1.0
      %v1354 = vadd.f32 %v1338, 1.0
      %v1355 = vadd.f32 %v1339, 1.0
      %v1356 = vadd.f32 %v1340, 1.0
      %v1357 = vadd.f32 %v1341, 1.0
      %v1358 = vadd.f32 %v1342, 1.0
      %v1359 = vadd.f32 %v1343, 1.0
      %v1360 = vadd.f32 %v1344, 1.0
      %v1361 = vadd.f32 %v1345, 1.0
      %v1362 = vadd.f32 %v1346, 1.0
      %v1363 = vadd.f32 %v1347, 1.0
      %v1364 = vadd.f32 %v1348, 1.0
      %v1365 = vadd.f32 %v1349, 1.0
      %v1366 = vadd.f32 %v1350, 1.0
      %v1367 = vadd.f32 %v1351, 1.0
      %v1368 = vmul.f32 %v1240, %v1352
      %v1369 = vmul.f32 %v1241, %v1353
      %v1370 = vmul.f32 %v1242, %v1354
      %v1371 = vmul.f32 %v1243, %v1355
      %v1372 = vmul.f32 %v1244, %v1356
      %v1373 = vmul.f32 %v1245, %v1357
      %v1374 = vmul.f32 %v1246, %v1358
      %v1375 = vmul.f32 %v1247, %v1359
      %v1376 = vmul.f32 %v1248, %v1360
      %v1377 = vmul.f32 %v1249, %v1361
      %v1378 = vmul.f32 %v1250, %v1362
      %v1379 = vmul.f32 %v1251, %v1363
      %v1380 = vmul.f32 %v1252, %v1364
      %v1381 = vmul.f32 %v1253, %v1365
      %v1382 = vmul.f32 %v1254, %v1366
      %v1383 = vmul.f32 %v1255, %v1367
      %v1384 = vadd.f32 %v1368, %v1369
      %1385 = vadd.xlane.f32.xlu0 %v1384
      %v1386 = vpop.xlane.xlu0 %1385
      %v1387 = vadd.f32 %v1370, %v1371
      %1388 = vadd.xlane.f32.xlu0 %v1387
      %v1389 = vpop.xlane.xlu0 %1388
      %v1390 = vadd.f32 %v1372, %v1373
      %1391 = vadd.xlane.f32.xlu0 %v1390
      %v1392 = vpop.xlane.xlu0 %1391
      %v1393 = vadd.f32 %v1374, %v1375
      %1394 = vadd.xlane.f32.xlu0 %v1393
      %v1395 = vpop.xlane.xlu0 %1394
      %v1396 = vadd.f32 %v1376, %v1377
      %1397 = vadd.xlane.f32.xlu0 %v1396
      %v1398 = vpop.xlane.xlu0 %1397
      %v1399 = vadd.f32 %v1378, %v1379
      %1400 = vadd.xlane.f32.xlu0 %v1399
      %v1401 = vpop.xlane.xlu0 %1400
      %v1402 = vadd.f32 %v1380, %v1381
      %1403 = vadd.xlane.f32.xlu0 %v1402
      %v1404 = vpop.xlane.xlu0 %1403
      %v1405 = vadd.f32 %v1382, %v1383
      %1406 = vadd.xlane.f32.xlu0 %v1405
      %v1407 = vpop.xlane.xlu0 %1406
      %v1408 = vmul.f32 %v1386, %v708
      %v1409 = vmul.f32 %v1389, %v708
      %v1410 = vmul.f32 %v1392, %v708
      %v1411 = vmul.f32 %v1395, %v708
      %v1412 = vmul.f32 %v1398, %v708
      %v1413 = vmul.f32 %v1401, %v708
      %v1414 = vmul.f32 %v1404, %v708
      %v1415 = vmul.f32 %v1407, %v708
      %v1416 = vmul.f32 %v366, %v1408
      %v1417 = vmul.f32 %v367, %v1409
      %v1418 = vmul.f32 %v368, %v1410
      %v1419 = vmul.f32 %v369, %v1411
      %v1420 = vmul.f32 %v370, %v1412
      %v1421 = vmul.f32 %v371, %v1413
      %v1422 = vmul.f32 %v372, %v1414
      %v1423 = vmul.f32 %v373, %v1415
      %v1424 = vsel %vm725, %v1416, 0.0
      %v1425 = vsel %vm725, %v1417, 0.0
      %v1426 = vadd.f32 %v1424, %v1425
      %v1427 = vsel %vm725, %v1418, 0.0
      %v1428 = vadd.f32 %v1426, %v1427
      %v1429 = vsel %vm725, %v1419, 0.0
      %v1430 = vadd.f32 %v1428, %v1429
      %v1431 = vsel %vm725, %v1420, 0.0
      %v1432 = vadd.f32 %v1430, %v1431
      %v1433 = vsel %vm725, %v1421, 0.0
      %v1434 = vadd.f32 %v1432, %v1433
      %v1435 = vsel %vm725, %v1422, 0.0
      %v1436 = vadd.f32 %v1434, %v1435
      %v1437 = vsel %vm725, %v1423, 0.0
      %v1438 = vadd.f32 %v1436, %v1437
      %v1439 = vrot.slane %v1438, 4
      %v1440 = vadd.f32 %v1438, %v1439
      %v1441 = vrot.slane %v1440, 2
      %v1442 = vadd.f32 %v1440, %v1441
      %v1443 = vrot.slane %v1442, 1
      %v1444 = vadd.f32 %v1442, %v1443
      %v1445 = vadd.f32 %v1444, %v374
      %v1446 = vmax.f32 %v1445, 0.0
      %v1447 = vperm.slane %v1446, 0
      %v1448 = vmul.f32 %v375, %v1447
      %v1449 = vmul.f32 %v376, %v1447
      %v1450 = vmul.f32 %v377, %v1447
      %v1451 = vmul.f32 %v378, %v1447
      %v1452 = vmul.f32 %v379, %v1447
      %v1453 = vmul.f32 %v380, %v1447
      %v1454 = vmul.f32 %v381, %v1447
      %v1455 = vmul.f32 %v382, %v1447
      %v1456 = vsel %vm725, %v1448, 0.0
      %1457 = vadd.xlane.f32.xlu0 %v1456
      %v1458 = vpop.xlane.xlu0 %1457
      %v1459 = vsel %vm725, %v1449, 0.0
      %1460 = vadd.xlane.f32.xlu0 %v1459
      %v1461 = vpop.xlane.xlu0 %1460
      %v1462 = vsel %vm725, %v1450, 0.0
      %1463 = vadd.xlane.f32.xlu0 %v1462
      %v1464 = vpop.xlane.xlu0 %1463
      %v1465 = vsel %vm725, %v1451, 0.0
      %1466 = vadd.xlane.f32.xlu0 %v1465
      %v1467 = vpop.xlane.xlu0 %1466
      %v1468 = vsel %vm725, %v1452, 0.0
      %1469 = vadd.xlane.f32.xlu0 %v1468
      %v1470 = vpop.xlane.xlu0 %1469
      %v1471 = vsel %vm725, %v1453, 0.0
      %1472 = vadd.xlane.f32.xlu0 %v1471
      %v1473 = vpop.xlane.xlu0 %1472
      %v1474 = vsel %vm725, %v1454, 0.0
      %1475 = vadd.xlane.f32.xlu0 %v1474
      %v1476 = vpop.xlane.xlu0 %1475
      %v1477 = vsel %vm725, %v1455, 0.0
      %1478 = vadd.xlane.f32.xlu0 %v1477
      %v1479 = vpop.xlane.xlu0 %1478
      %v1480 = vadd.f32 %v1458, %v383
      %v1481 = vadd.f32 %v1461, %v384
      %v1482 = vadd.f32 %v1464, %v385
      %v1483 = vadd.f32 %v1467, %v386
      %v1484 = vadd.f32 %v1470, %v387
      %v1485 = vadd.f32 %v1473, %v388
      %v1486 = vadd.f32 %v1476, %v389
      %v1487 = vadd.f32 %v1479, %v390
      %v1488 = vxor.u32 %v1480, 2147483648
      %v1489 = vxor.u32 %v1481, 2147483648
      %v1490 = vxor.u32 %v1482, 2147483648
      %v1491 = vxor.u32 %v1483, 2147483648
      %v1492 = vxor.u32 %v1484, 2147483648
      %v1493 = vxor.u32 %v1485, 2147483648
      %v1494 = vxor.u32 %v1486, 2147483648
      %v1495 = vxor.u32 %v1487, 2147483648
      %v1496 = vmul.f32 %v1488, 1.442695
      %v1497 = vpow.pop %v1496
      %v1498 = vmul.f32 %v1489, 1.442695
      %v1499 = vpow.pop %v1498
      %v1500 = vmul.f32 %v1490, 1.442695
      %v1501 = vpow.pop %v1500
      %v1502 = vmul.f32 %v1491, 1.442695
      %v1503 = vpow.pop %v1502
      %v1504 = vmul.f32 %v1492, 1.442695
      %v1505 = vpow.pop %v1504
      %v1506 = vmul.f32 %v1493, 1.442695
      %v1507 = vpow.pop %v1506
      %v1508 = vmul.f32 %v1494, 1.442695
      %v1509 = vpow.pop %v1508
      %v1510 = vmul.f32 %v1495, 1.442695
      %v1511 = vpow.pop %v1510
      %v1512 = vadd.f32 %v1497, 1.0
      %v1513 = vadd.f32 %v1499, 1.0
      %v1514 = vadd.f32 %v1501, 1.0
      %v1515 = vadd.f32 %v1503, 1.0
      %v1516 = vadd.f32 %v1505, 1.0
      %v1517 = vadd.f32 %v1507, 1.0
      %v1518 = vadd.f32 %v1509, 1.0
      %v1519 = vadd.f32 %v1511, 1.0
      %v1520 = vrcp.pop %v1512
      %v1521 = vmul.f32 %v1512, %v1520
      %v1522 = vsub.f32 1.0, %v1521
      %v1523 = vmul.f32 %v1520, %v1522
      %v1524 = vadd.f32 %v1520, %v1523
      %vm1525 = vweird.f32 %v1512
      %vm1526 = vweird.f32 %v1520
      %vm1527 = vmor %vm1525, %vm1526
      %v1528 = vsel %vm1527, %v1520, %v1524
      %v1529 = vand.u32 2147483647, %v1512
      %vm1530 = vcmp.eq.f32.partialorder %v1529, 8.507059e+37
      %v1531 = vand.u32 %v1512, 2147483648
      %v1532 = vor.u32 1.1754944e-38, %v1531
      %v1533 = vsel %vm1530, %v1532, %v1528
      %v1534 = vmul.f32 1.0, %v1533
      %v1535 = vrcp.pop %v1513
      %v1536 = vmul.f32 %v1513, %v1535
      %v1537 = vsub.f32 1.0, %v1536
      %v1538 = vmul.f32 %v1535, %v1537
      %v1539 = vadd.f32 %v1535, %v1538
      %vm1540 = vweird.f32 %v1513
      %vm1541 = vweird.f32 %v1535
      %vm1542 = vmor %vm1540, %vm1541
      %v1543 = vsel %vm1542, %v1535, %v1539
      %v1544 = vand.u32 2147483647, %v1513
      %vm1545 = vcmp.eq.f32.partialorder %v1544, 8.507059e+37
      %v1546 = vand.u32 %v1513, 2147483648
      %v1547 = vor.u32 1.1754944e-38, %v1546
      %v1548 = vsel %vm1545, %v1547, %v1543
      %v1549 = vmul.f32 1.0, %v1548
      %v1550 = vrcp.pop %v1514
      %v1551 = vmul.f32 %v1514, %v1550
      %v1552 = vsub.f32 1.0, %v1551
      %v1553 = vmul.f32 %v1550, %v1552
      %v1554 = vadd.f32 %v1550, %v1553
      %vm1555 = vweird.f32 %v1514
      %vm1556 = vweird.f32 %v1550
      %vm1557 = vmor %vm1555, %vm1556
      %v1558 = vsel %vm1557, %v1550, %v1554
      %v1559 = vand.u32 2147483647, %v1514
      %vm1560 = vcmp.eq.f32.partialorder %v1559, 8.507059e+37
      %v1561 = vand.u32 %v1514, 2147483648
      %v1562 = vor.u32 1.1754944e-38, %v1561
      %v1563 = vsel %vm1560, %v1562, %v1558
      %v1564 = vmul.f32 1.0, %v1563
      %v1565 = vrcp.pop %v1515
      %v1566 = vmul.f32 %v1515, %v1565
      %v1567 = vsub.f32 1.0, %v1566
      %v1568 = vmul.f32 %v1565, %v1567
      %v1569 = vadd.f32 %v1565, %v1568
      %vm1570 = vweird.f32 %v1515
      %vm1571 = vweird.f32 %v1565
      %vm1572 = vmor %vm1570, %vm1571
      %v1573 = vsel %vm1572, %v1565, %v1569
      %v1574 = vand.u32 2147483647, %v1515
      %vm1575 = vcmp.eq.f32.partialorder %v1574, 8.507059e+37
      %v1576 = vand.u32 %v1515, 2147483648
      %v1577 = vor.u32 1.1754944e-38, %v1576
      %v1578 = vsel %vm1575, %v1577, %v1573
      %v1579 = vmul.f32 1.0, %v1578
      %v1580 = vrcp.pop %v1516
      %v1581 = vmul.f32 %v1516, %v1580
      %v1582 = vsub.f32 1.0, %v1581
      %v1583 = vmul.f32 %v1580, %v1582
      %v1584 = vadd.f32 %v1580, %v1583
      %vm1585 = vweird.f32 %v1516
      %vm1586 = vweird.f32 %v1580
      %vm1587 = vmor %vm1585, %vm1586
      %v1588 = vsel %vm1587, %v1580, %v1584
      %v1589 = vand.u32 2147483647, %v1516
      %vm1590 = vcmp.eq.f32.partialorder %v1589, 8.507059e+37
      %v1591 = vand.u32 %v1516, 2147483648
      %v1592 = vor.u32 1.1754944e-38, %v1591
      %v1593 = vsel %vm1590, %v1592, %v1588
      %v1594 = vmul.f32 1.0, %v1593
      %v1595 = vrcp.pop %v1517
      %v1596 = vmul.f32 %v1517, %v1595
      %v1597 = vsub.f32 1.0, %v1596
      %v1598 = vmul.f32 %v1595, %v1597
      %v1599 = vadd.f32 %v1595, %v1598
      %vm1600 = vweird.f32 %v1517
      %vm1601 = vweird.f32 %v1595
      %vm1602 = vmor %vm1600, %vm1601
      %v1603 = vsel %vm1602, %v1595, %v1599
      %v1604 = vand.u32 2147483647, %v1517
      %vm1605 = vcmp.eq.f32.partialorder %v1604, 8.507059e+37
      %v1606 = vand.u32 %v1517, 2147483648
      %v1607 = vor.u32 1.1754944e-38, %v1606
      %v1608 = vsel %vm1605, %v1607, %v1603
      %v1609 = vmul.f32 1.0, %v1608
      %v1610 = vrcp.pop %v1518
      %v1611 = vmul.f32 %v1518, %v1610
      %v1612 = vsub.f32 1.0, %v1611
      %v1613 = vmul.f32 %v1610, %v1612
      %v1614 = vadd.f32 %v1610, %v1613
      %vm1615 = vweird.f32 %v1518
      %vm1616 = vweird.f32 %v1610
      %vm1617 = vmor %vm1615, %vm1616
      %v1618 = vsel %vm1617, %v1610, %v1614
      %v1619 = vand.u32 2147483647, %v1518
      %vm1620 = vcmp.eq.f32.partialorder %v1619, 8.507059e+37
      %v1621 = vand.u32 %v1518, 2147483648
      %v1622 = vor.u32 1.1754944e-38, %v1621
      %v1623 = vsel %vm1620, %v1622, %v1618
      %v1624 = vmul.f32 1.0, %v1623
      %v1625 = vrcp.pop %v1519
      %v1626 = vmul.f32 %v1519, %v1625
      %v1627 = vsub.f32 1.0, %v1626
      %v1628 = vmul.f32 %v1625, %v1627
      %v1629 = vadd.f32 %v1625, %v1628
      %vm1630 = vweird.f32 %v1519
      %vm1631 = vweird.f32 %v1625
      %vm1632 = vmor %vm1630, %vm1631
      %v1633 = vsel %vm1632, %v1625, %v1629
      %v1634 = vand.u32 2147483647, %v1519
      %vm1635 = vcmp.eq.f32.partialorder %v1634, 8.507059e+37
      %v1636 = vand.u32 %v1519, 2147483648
      %v1637 = vor.u32 1.1754944e-38, %v1636
      %v1638 = vsel %vm1635, %v1637, %v1633
      %v1639 = vmul.f32 1.0, %v1638
      %1641 = vset.pattern.permute.xlu0 0
      %1642 = vperm.xlu0 %1641, %v1534
      %v1643 = vpop.permute.xlu0 %1642
      %1646 = vset.pattern.permute.xlu0 0
      %1647 = vperm.xlu0 %1646, %v1549
      %v1648 = vpop.permute.xlu0 %1647
      %1651 = vset.pattern.permute.xlu0 0
      %1652 = vperm.xlu0 %1651, %v1564
      %v1653 = vpop.permute.xlu0 %1652
      %1656 = vset.pattern.permute.xlu0 0
      %1657 = vperm.xlu0 %1656, %v1579
      %v1658 = vpop.permute.xlu0 %1657
      %1661 = vset.pattern.permute.xlu0 0
      %1662 = vperm.xlu0 %1661, %v1594
      %v1663 = vpop.permute.xlu0 %1662
      %1666 = vset.pattern.permute.xlu0 0
      %1667 = vperm.xlu0 %1666, %v1609
      %v1668 = vpop.permute.xlu0 %1667
      %1671 = vset.pattern.permute.xlu0 0
      %1672 = vperm.xlu0 %1671, %v1624
      %v1673 = vpop.permute.xlu0 %1672
      %1676 = vset.pattern.permute.xlu0 0
      %1677 = vperm.xlu0 %1676, %v1639
      %v1678 = vpop.permute.xlu0 %1677
      %v1680 = vmul.f32 %v1368, %v1643
      %v1681 = vmul.f32 %v1369, %v1643
      %v1682 = vmul.f32 %v1370, %v1648
      %v1683 = vmul.f32 %v1371, %v1648
      %v1684 = vmul.f32 %v1372, %v1653
      %v1685 = vmul.f32 %v1373, %v1653
      %v1686 = vmul.f32 %v1374, %v1658
      %v1687 = vmul.f32 %v1375, %v1658
      %v1688 = vmul.f32 %v1376, %v1663
      %v1689 = vmul.f32 %v1377, %v1663
      %v1690 = vmul.f32 %v1378, %v1668
      %v1691 = vmul.f32 %v1379, %v1668
      %v1692 = vmul.f32 %v1380, %v1673
      %v1693 = vmul.f32 %v1381, %v1673
      %v1694 = vmul.f32 %v1382, %v1678
      %v1695 = vmul.f32 %v1383, %v1678
      %v1696 = vpack.c.bf16 %v1682, %v1680
      %v1697 = vpack.c.bf16 %v1683, %v1681
      %v1698 = vpack.c.bf16 %v1686, %v1684
      %v1699 = vpack.c.bf16 %v1687, %v1685
      %v1700 = vpack.c.bf16 %v1690, %v1688
      %v1701 = vpack.c.bf16 %v1691, %v1689
      %v1702 = vpack.c.bf16 %v1694, %v1692
      %v1703 = vpack.c.bf16 %v1695, %v1693
      %1704 = vmatpush.bf16.msra.mxu0 0
      %1705 = vmatpush.bf16.msra.mxu0 0
      %1706 = vmatpush.bf16.msra.mxu0 0
      %1707 = vmatpush.bf16.msra.mxu0 0
      %1708 = vmatpush.bf16.msra.mxu0 %v1702
      %1709 = vmatpush.bf16.msra.mxu0 %v1700
      %1710 = vmatpush.bf16.msra.mxu0 %v1698
      %1711 = vmatpush.bf16.msra.mxu0 %v1696
      %1712 = vmatmul.bf16.gmra.mxu0 %v1038
      %v1713 = vpop.f32.mrf.mxu0
      %v1714 = vadd.f32 %v1009, %v1713
      %v1715 = vpop.f32.mrf.mxu0
      %v1716 = vadd.f32 %v1014, %v1715
      %1717 = vmatmul.bf16.gmra.mxu0 %v1041
      %v1718 = vpop.f32.mrf.mxu0
      %v1719 = vadd.f32 %v1019, %v1718
      %v1720 = vpop.f32.mrf.mxu0
      %v1721 = vadd.f32 %v1024, %v1720
      %1722 = vdwg.mxu0
      %1723 = vmatpush.bf16.msra.mxu0 0
      %1724 = vmatpush.bf16.msra.mxu0 0
      %1725 = vmatpush.bf16.msra.mxu0 0
      %1726 = vmatpush.bf16.msra.mxu0 0
      %1727 = vmatpush.bf16.msra.mxu0 %v1703
      %1728 = vmatpush.bf16.msra.mxu0 %v1701
      %1729 = vmatpush.bf16.msra.mxu0 %v1699
      %1730 = vmatpush.bf16.msra.mxu0 %v1697
      %1731 = vmatmul.bf16.gmra.mxu0 %v1038
      %v1732 = vpop.f32.mrf.mxu0
      %v1733 = vadd.f32 %v1009, %v1732
      %v1734 = vpop.f32.mrf.mxu0
      %v1735 = vadd.f32 %v1014, %v1734
      %1736 = vmatmul.bf16.gmra.mxu0 %v1041
      %v1737 = vpop.f32.mrf.mxu0
      %v1738 = vadd.f32 %v1019, %v1737
      %v1739 = vpop.f32.mrf.mxu0
      %v1740 = vadd.f32 %v1024, %v1739
      %1741 = vdwg.mxu0
      %v1742 = vmul.f32 %v1714, 0.5
      %v1743 = vmul.f32 %v1733, 0.5
      %v1744 = vmul.f32 %v1716, 0.5
      %v1745 = vmul.f32 %v1735, 0.5
      %v1746 = vmul.f32 %v1719, 0.5
      %v1747 = vmul.f32 %v1738, 0.5
      %v1748 = vmul.f32 %v1721, 0.5
      %v1749 = vmul.f32 %v1740, 0.5
      %v1750 = vmul.f32 %v1714, 0.044715
      %v1751 = vmul.f32 %v1733, 0.044715
      %v1752 = vmul.f32 %v1716, 0.044715
      %v1753 = vmul.f32 %v1735, 0.044715
      %v1754 = vmul.f32 %v1719, 0.044715
      %v1755 = vmul.f32 %v1738, 0.044715
      %v1756 = vmul.f32 %v1721, 0.044715
      %v1757 = vmul.f32 %v1740, 0.044715
      %v1758 = vmul.f32 %v1750, %v1714
      %v1759 = vmul.f32 %v1751, %v1733
      %v1760 = vmul.f32 %v1752, %v1716
      %v1761 = vmul.f32 %v1753, %v1735
      %v1762 = vmul.f32 %v1754, %v1719
      %v1763 = vmul.f32 %v1755, %v1738
      %v1764 = vmul.f32 %v1756, %v1721
      %v1765 = vmul.f32 %v1757, %v1740
      %v1766 = vmul.f32 %v1758, %v1714
      %v1767 = vmul.f32 %v1759, %v1733
      %v1768 = vmul.f32 %v1760, %v1716
      %v1769 = vmul.f32 %v1761, %v1735
      %v1770 = vmul.f32 %v1762, %v1719
      %v1771 = vmul.f32 %v1763, %v1738
      %v1772 = vmul.f32 %v1764, %v1721
      %v1773 = vmul.f32 %v1765, %v1740
      %v1774 = vadd.f32 %v1714, %v1766
      %v1775 = vadd.f32 %v1733, %v1767
      %v1776 = vadd.f32 %v1716, %v1768
      %v1777 = vadd.f32 %v1735, %v1769
      %v1778 = vadd.f32 %v1719, %v1770
      %v1779 = vadd.f32 %v1738, %v1771
      %v1780 = vadd.f32 %v1721, %v1772
      %v1781 = vadd.f32 %v1740, %v1773
      %v1782 = vmul.f32 %v1774, 0.7978846
      %v1783 = vmul.f32 %v1775, 0.7978846
      %v1784 = vmul.f32 %v1776, 0.7978846
      %v1785 = vmul.f32 %v1777, 0.7978846
      %v1786 = vmul.f32 %v1778, 0.7978846
      %v1787 = vmul.f32 %v1779, 0.7978846
      %v1788 = vmul.f32 %v1780, 0.7978846
      %v1789 = vmul.f32 %v1781, 0.7978846
      %v1790 = vtanh.pop %v1782
      %v1791 = vtanh.pop %v1783
      %v1792 = vtanh.pop %v1784
      %v1793 = vtanh.pop %v1785
      %v1794 = vtanh.pop %v1786
      %v1795 = vtanh.pop %v1787
      %v1796 = vtanh.pop %v1788
      %v1797 = vtanh.pop %v1789
      %v1798 = vadd.f32 %v1790, 1.0
      %v1799 = vadd.f32 %v1791, 1.0
      %v1800 = vadd.f32 %v1792, 1.0
      %v1801 = vadd.f32 %v1793, 1.0
      %v1802 = vadd.f32 %v1794, 1.0
      %v1803 = vadd.f32 %v1795, 1.0
      %v1804 = vadd.f32 %v1796, 1.0
      %v1805 = vadd.f32 %v1797, 1.0
      %v1806 = vmul.f32 %v1742, %v1798
      %v1807 = vmul.f32 %v1743, %v1799
      %v1808 = vmul.f32 %v1744, %v1800
      %v1809 = vmul.f32 %v1745, %v1801
      %v1810 = vmul.f32 %v1746, %v1802
      %v1811 = vmul.f32 %v1747, %v1803
      %v1812 = vmul.f32 %v1748, %v1804
      %v1813 = vmul.f32 %v1749, %v1805
      %v1814 = vadd.f32 %v1806, %v1170
      %v1815 = vadd.f32 %v1807, %v1171
      %v1816 = vadd.f32 %v1808, %v1172
      %v1817 = vadd.f32 %v1809, %v1173
      %v1818 = vadd.f32 %v1810, %v1174
      %v1819 = vadd.f32 %v1811, %v1175
      %v1820 = vadd.f32 %v1812, %v1176
      %v1821 = vadd.f32 %v1813, %v1177
      %s1822 = scalar_lea.vmem %s339, 64
      %1823 = vst [vmem:[%s1822] sm:$0xff] %v1814
      %1824 = vst [vmem:[%s1822 + $0x8] sm:$0xff] %v1815
      %1825 = vst [vmem:[%s1822 + $0x10] sm:$0xff] %v1816
      %1826 = vst [vmem:[%s1822 + $0x18] sm:$0xff] %v1817
      %1827 = vst [vmem:[%s1822 + $0x20] sm:$0xff] %v1818
      %1828 = vst [vmem:[%s1822 + $0x28] sm:$0xff] %v1819
      %1829 = vst [vmem:[%s1822 + $0x30] sm:$0xff] %v1820
      %1830 = vst [vmem:[%s1822 + $0x38] sm:$0xff] %v1821
      %s1831 = smul.u32 2, %s20
      %p1832 = scmp.lt.s32.totalorder %s1831, 3
      %s1833 = scalar_select %p1832, %s1831, 3
      %s1834 = smul.addr %s1833, 8
      %s1835 = smul.addr %s1834, 8
      %s1836 = scalar_lea.vmem %s9, %s1835
      // Predicated region
      $region57: #{mix_channel.1} parent=55 // pred_check
        %p1837 = pneg %p232
      $region58: #{mix_channel.1} parent=55 // pred_check_branch
        %1839 = sbr.rel (%p1837) target = $region60
      $region59: #{mix_channel.1} parent=55 // pred_region
        %s1840 = smul.u32 2, %s20
      $region60: #{mix_channel.1} parent=55 // pred_fallthru
        _
    $region56: #{mix_channel.1} parent=5 // pred_fallthru
      _
    %p1841 = scmp.le.s32.totalorder 2, %s15
    // Predicated region
    $region61: #{mix_channel.1} parent=5 // pred_check
      %p1842 = pneg %p1841
    $region62: #{mix_channel.1} parent=5 // pred_check_branch
      %1844 = sbr.rel (%p1842) target = $region64
    $region63: #{mix_channel.1} parent=5 // pred_region
      %s1845 = ssub.s32 %s15, 2
      // Predicated region
      $region65: #{mix_channel.1} parent=63 // pred_check
        %p1846 = pneg %p238
      $region66: #{mix_channel.1} parent=63 // pred_check_branch
        %1848 = sbr.rel (%p1846) target = $region68
      $region67: #{mix_channel.1} parent=63 // pred_region
        %s1849 = smul.u32 2, %s21
        %p1850 = scmp.lt.s32.totalorder %s1849, 3
        %s1851 = scalar_select %p1850, %s1849, 3
        %s1852 = smul.addr %s1851, 8
        %s1853 = smul.addr %s1852, 8
        %s1854 = scalar_lea.vmem %s9, %s1853
      $region68: #{mix_channel.1} parent=63 // pred_fallthru
        _
    $region64: #{mix_channel.1} parent=5 // pred_fallthru
      _
  $region6: #{mix_channel.1} parent=0 // loop_footer
    %s19 = sadd.s32 1, %s15
  $region7: #{mix_channel.1} parent=0 // loop_footer_branch
    %14 = sbr.rel target = $region3
  $region8: #{mix_channel.1} parent=0 // loop_exit
    _

</llo_original>
